<compile_context>
chip_gen: v5e
topology: v5e:2x2
jax: 0.10.0
libtpu: 0.0.40
codegen_flags: <defaults>
</compile_context>

<pallas_src>
import functools

import numpy as np
import jax
import jax.numpy as jnp
from jax import lax
from jax.experimental import pallas as pl
from jax.experimental.pallas import tpu as pltpu


# ----------------------------------------------------------------------------- Pallas kernel
def _deformable_layer_kernel(
    # per-(batch, seq-tile) blocks
    hs_ref, pos_ref, ref_ref,
    # per-batch scalar (SMEM) and folded M matrix
    inv_ref, m_ref,
    # constants / weights (full blocks, constant index map)
    seg_ref, sel_ref,
    wqk_ref, bqk_ref, bo_ref,
    g1_ref, be1_ref, w1_ref, b1_ref, w2_ref, b2_ref, g2_ref, be2_ref,
    # outputs
    out_ref, attn_ref=None,
    *, st, d, hp, eps):
  f32, bf16 = jnp.float32, jnp.bfloat16
  b = pl.program_id(0)

  hs_bf = hs_ref[...].reshape(st, d)                               # bf16 residual source
  hsp = hs_bf + pos_ref[...].reshape(st, d)                        # bf16 query = hs + pos

  # ---- fused sampling-offset | attention-weight projection (one wide bf16 MXU call) -------
  proj = jnp.dot(hsp, wqk_ref[...], preferred_element_type=f32) + bqk_ref[...]   # (st, 2*hp)
  so = proj[:, :hp]
  aw = proj[:, hp:]

  # ---- grid_sample width weight (width == 1, zeros padding, align_corners=False) ----------
  inv = inv_ref[b, 0]                                              # 1 / attention_mask.sum(-1)
  ix = ref_ref[...].reshape(st, 1) + so * inv - 0.5                # unnormalized x coordinate
  left = jnp.floor(ix)
  frac = ix - left
  wx = (jnp.where(left == 0.0, 1.0 - frac, 0.0)                    # bilinear weight of pixel 0
        + jnp.where(left == -1.0, frac, 0.0))

  # ---- per-head softmax over points (segmented sums via a tiny constant bf16 matmul) ------
  e = jnp.exp(aw - jnp.max(aw, axis=-1, keepdims=True))            # row-wide shift is valid
  den = jnp.dot(e.astype(bf16), seg_ref[...], preferred_element_type=f32)
  # guard: a fully-underflowed head gives zero weights instead of inf/NaN
  p = e * pl.reciprocal(jnp.maximum(den, 1e-30), approx=True)      # (st, hp)

  if attn_ref is not None:
    attn_ref[...] = p.astype(attn_ref.dtype).reshape(1, st, hp)

  # ---- deformable attention collapsed to coef @ M (M folds masked mid-row value & W_out) --
  coef = jnp.dot((p * wx).astype(bf16), sel_ref[...], preferred_element_type=f32)
  attn_out = jnp.dot(coef.astype(bf16), m_ref[0], preferred_element_type=f32) + bo_ref[...]

  # ---- residual + self_attn_layer_norm (f32) ----------------------------------------------
  x = hs_bf.astype(f32) + attn_out
  mu = jnp.mean(x, axis=-1, keepdims=True)
  var = jnp.mean((x - mu) * (x - mu), axis=-1, keepdims=True)
  x = (x - mu) * lax.rsqrt(var + eps) * g1_ref[...] + be1_ref[...]

  # ---- FFN (relu) + residual + final_layer_norm --------------------------------------------
  h1 = jnp.maximum(jnp.dot(x.astype(bf16), w1_ref[...], preferred_element_type=f32)
                   + b1_ref[...], 0.0).astype(bf16)                # single bf16 materialization
  h2 = jnp.dot(h1, w2_ref[...], preferred_element_type=f32) + b2_ref[...]
  y = x + h2
  mu2 = jnp.mean(y, axis=-1, keepdims=True)
  var2 = jnp.mean((y - mu2) * (y - mu2), axis=-1, keepdims=True)
  y = (y - mu2) * lax.rsqrt(var2 + eps) * g2_ref[...] + be2_ref[...]

  out_ref[...] = y.astype(out_ref.dtype).reshape(1, st, d)


# ----------------------------------------------------------------------------- tile picker
def _pick_seq_tile(S, batch=1, cap=512):
  """Seq tile: multiple of 8, <= cap, padding-minimizing; >=2 grid steps when batch == 1."""
  cap = max(8, (cap // 8) * 8)
  if batch == 1 and S > 8:
    cap = min(cap, max(8, (((S + 1) // 2 + 7) // 8) * 8))   # keep both v7x TensorCores busy
  if S <= cap:
    return ((S + 7) // 8) * 8
  best_t, best_pad = cap, (-S) % cap
  t = cap - 8
  while t >= 8 and best_pad > 0:
    pad = (-S) % t
    if pad < best_pad:
      best_t, best_pad = t, pad
    t -= 8
  return best_t


# ----------------------------------------------------------------------------- wrapper
def grounded_audio_deformable_layer(hidden_states, attention_mask, position_embeddings,
                                    reference_points, params, *, num_heads, n_points,
                                    eps=1e-5, seq_tile=None, return_attn=True,
                                    out_dtype=jnp.bfloat16):
  B, S, D = hidden_states.shape
  H, P = num_heads, n_points
  HP = H * P
  assert D % H == 0, "d_model must be divisible by num_heads"
  HD = D // H
  FF = params["fc1_w"].shape[1]
  H_PAD = max(8, ((H + 7) // 8) * 8)          # pad head dim so coef @ M contraction is >= 8

  # Hard-coded collapse preconditions: single level, width-1 spatial grid, 1-D reference point.
  assert reference_points.shape[0] == B and reference_points.shape[1] == S

  f32, bf16 = jnp.float32, jnp.bfloat16
  hs32 = hidden_states.astype(f32)
  mask_f = attention_mask.astype(f32)                                     # (B, S)
  ref = reference_points.astype(f32).reshape(B, S, -1)[:, :, :1]          # (B, S, 1)

  # ---- tiny per-batch pre-pass: 1/mask-count and folded value/output projection -----------
  inv_msum = 1.0 / jnp.sum(mask_f, axis=-1, keepdims=True)                # (B, 1) -> SMEM

  # grid_sample uses y == 0 -> only the middle row(s) of `value` are ever sampled.
  iy = (S - 1) / 2.0
  top = int(np.floor(iy))
  fy = float(iy - top)
  v_mid = (1.0 - fy) * ((hs32[:, top, :] @ params["value_w"] + params["value_b"])
                        * mask_f[:, top][:, None])
  if fy > 0.0 and top + 1 < S:
    v_mid = v_mid + fy * ((hs32[:, top + 1, :] @ params["value_w"] + params["value_b"])
                          * mask_f[:, top + 1][:, None])
  m_mat = jnp.einsum('bhc,hcd->bhd', v_mid.reshape(B, H, HD),
                     params["out_w"].reshape(H, HD, D))                   # (B, H, D)
  m_mat = jnp.pad(m_mat, ((0, 0), (0, H_PAD - H), (0, 0))).astype(bf16)

  # constant helper matrices (exact 0/1 -> lossless in bf16)
  seg = jnp.asarray(np.kron(np.eye(H), np.ones((P, P))), dtype=bf16)                      # (HP, HP)
  sel = jnp.asarray(np.pad(np.kron(np.eye(H), np.ones((P, 1))),
                           ((0, 0), (0, H_PAD - H))), dtype=bf16)                         # (HP, H_PAD)

  # fused sampling_offsets | attention_weights projection
  wqk = jnp.concatenate([params["so_w"], params["aw_w"]], axis=1).astype(bf16)            # (D, 2*HP)
  bqk = jnp.concatenate([params["so_b"], params["aw_b"]], axis=1).astype(f32)             # (1, 2*HP)

  st = seq_tile or _pick_seq_tile(S, batch=B)
  S_pad = ((S + st - 1) // st) * st
  pad_s = S_pad - S

  hs_b = hidden_states.astype(bf16)
  pos_b = position_embeddings.astype(bf16)
  if pad_s:
    hs_b = jnp.pad(hs_b, ((0, 0), (0, pad_s), (0, 0)))
    pos_b = jnp.pad(pos_b, ((0, 0), (0, pad_s), (0, 0)))
    ref = jnp.pad(ref, ((0, 0), (0, pad_s), (0, 0)))

  grid = (B, S_pad // st)

  def tok_spec(last):
    return pl.BlockSpec((1, st, last), lambda b, s: (b, s, 0))

  def const_spec(shape):
    nd = len(shape)
    return pl.BlockSpec(shape, lambda b, s, _nd=nd: (0,) * _nd)

  in_specs = [
      tok_spec(D), tok_spec(D), tok_spec(1),                       # hs, pos, reference points
      pl.BlockSpec(memory_space=pltpu.MemorySpace.SMEM),           # 1/mask.sum() (B, 1) scalar table
      pl.BlockSpec((1, H_PAD, D), lambda b, s: (b, 0, 0)),         # folded M matrix (per batch)
      const_spec((HP, HP)), const_spec((HP, H_PAD)),               # seg / sel constants
      const_spec((D, 2 * HP)), const_spec((1, 2 * HP)),            # fused so|aw projection
      const_spec((1, D)),                                          # output_proj bias
      const_spec((1, D)), const_spec((1, D)),                      # self_attn_layer_norm
      const_spec((D, FF)), const_spec((1, FF)),                    # fc1
      const_spec((FF, D)), const_spec((1, D)),                     # fc2
      const_spec((1, D)), const_spec((1, D)),                      # final_layer_norm
  ]

  kernel = functools.partial(_deformable_layer_kernel, st=st, d=D, hp=HP, eps=eps)

  if return_attn:
    out_specs = (tok_spec(D), tok_spec(HP))
    out_shape = (jax.ShapeDtypeStruct((B, S_pad, D), out_dtype),
                 jax.ShapeDtypeStruct((B, S_pad, HP), out_dtype))
  else:
    out_specs = tok_spec(D)
    out_shape = jax.ShapeDtypeStruct((B, S_pad, D), out_dtype)

  try:
    vmem_cap = int(pltpu.get_tpu_info().vmem_capacity_bytes)
  except Exception:
    vmem_cap = 64 * 1024 * 1024
  vmem_limit = max(32 * 1024 * 1024, min(80 * 1024 * 1024, int(vmem_cap * 0.55)))

  res = pl.pallas_call(
      kernel,
      grid=grid,
      in_specs=in_specs,
      out_specs=out_specs,
      out_shape=out_shape,
      compiler_params=pltpu.CompilerParams(
          dimension_semantics=("parallel", "parallel"),
          vmem_limit_bytes=vmem_limit),
  )(hs_b, pos_b, ref,
    inv_msum, m_mat, seg, sel, wqk, bqk,
    params["out_b"].astype(f32),
    params["ln1_g"].astype(f32), params["ln1_b"].astype(f32),
    params["fc1_w"].astype(bf16), params["fc1_b"].astype(f32),
    params["fc2_w"].astype(bf16), params["fc2_b"].astype(f32),
    params["ln2_g"].astype(f32), params["ln2_b"].astype(f32))

  if return_attn:
    out, attn = res
    attn = attn[:, :S].reshape(B, S, H, P)
  else:
    out, attn = res, None
  return out[:, :S], attn


# ----------------------------------------------------------------------------- pure-JAX reference
def _grid_sample_bilinear_zeros(img, grid):
  """torch.nn.functional.grid_sample(mode='bilinear', padding_mode='zeros', align_corners=False)."""
  N, C, Hh, Wd = img.shape
  x, y = grid[..., 0], grid[..., 1]
  ix = ((x + 1) * Wd - 1) / 2
  iy = ((y + 1) * Hh - 1) / 2
  x0, y0 = jnp.floor(ix), jnp.floor(iy)
  x1, y1 = x0 + 1, y0 + 1
  wx1, wy1 = ix - x0, iy - y0
  wx0, wy0 = 1.0 - wx1, 1.0 - wy1

  def gather(xi, yi):
    valid = (xi >= 0) & (xi <= Wd - 1) & (yi >= 0) & (yi <= Hh - 1)
    xc = jnp.clip(xi, 0, Wd - 1).astype(jnp.int32)
    yc = jnp.clip(yi, 0, Hh - 1).astype(jnp.int32)
    g = jax.vmap(lambda im, yy, xx: im[:, yy, xx])(img, yc, xc)   # (N, C, Ho, Wo)
    return g * valid[:, None, :, :].astype(img.dtype)

  return (gather(x0, y0) * (wx0 * wy0)[:, None]
          + gather(x1, y0) * (wx1 * wy0)[:, None]
          + gather(x0, y1) * (wx0 * wy1)[:, None]
          + gather(x1, y1) * (wx1 * wy1)[:, None])


def _layernorm(x, g, b, eps):
  mu = jnp.mean(x, axis=-1, keepdims=True)
  var = jnp.mean((x - mu) ** 2, axis=-1, keepdims=True)
  return (x - mu) * lax.rsqrt(var + eps) * g + b


def reference_layer(hs, mask_bool, pos, ref_pts, params, H, P, eps):
  B, S, D = hs.shape
  hd = D // H
  hsp = hs + pos
  value = hs @ params["value_w"] + params["value_b"]
  value = jnp.where(mask_bool[..., None], value, 0.0)
  value4 = value.reshape(B, S, H, hd)
  so = (hsp @ params["so_w"] + params["so_b"]).reshape(B, S, H, P, 1)
  aw = jax.nn.softmax((hsp @ params["aw_w"] + params["aw_b"]).reshape(B, S, H, P), axis=-1)
  msum = mask_bool.sum(-1).astype(jnp.float32)
  loc = ref_pts[:, :, None, :, :1] + so / msum[:, None, None, None, None]

  grids = jnp.transpose(2 * loc - 1, (0, 2, 1, 3, 4)).reshape(B * H, S, P, 1)
  grids = jnp.concatenate([grids, jnp.zeros_like(grids)], axis=-1)
  v = jnp.transpose(value4.reshape(B, S, H * hd), (0, 2, 1)).reshape(B * H, hd, S)[..., None]
  sv = _grid_sample_bilinear_zeros(v, grids)                      # (B*H, hd, S, P)
  awt = jnp.transpose(aw, (0, 2, 1, 3)).reshape(B * H, 1, S, P)
  attn_out = jnp.transpose((sv * awt).sum(-1).reshape(B, H * hd, S), (0, 2, 1))
  attn_out = attn_out @ params["out_w"] + params["out_b"]

  x = _layernorm(hs + attn_out, params["ln1_g"], params["ln1_b"], eps)
  h1 = jnp.maximum(x @ params["fc1_w"] + params["fc1_b"], 0.0)
  y = _layernorm(x + (h1 @ params["fc2_w"] + params["fc2_b"]), params["ln2_g"], params["ln2_b"], eps)
  return y, aw


# ----------------------------------------------------------------------------- main
if __name__ == "__main__":
  B, S, D, H, P, FF = 2, 16, 32, 4, 4, 64
  eps = 1e-5

  key = jax.random.PRNGKey(0)
  keys = jax.random.split(key, 12)
  hs = jax.random.normal(keys[0], (B, S, D), jnp.float32)
  pos = 0.1 * jax.random.normal(keys[1], (B, S, D), jnp.float32)
  ref_pts = jax.random.uniform(keys[2], (B, S, 1, 1), jnp.float32)
  mask_bool = jnp.ones((B, S), dtype=bool).at[1, S - 3:].set(False)

  def lin(k, fan_in, fan_out):
    scale = 1.0 / np.sqrt(fan_in)
    kw, kb = jax.random.split(k)
    W = jax.random.uniform(kw, (fan_in, fan_out), jnp.float32, -scale, scale)
    b = jax.random.uniform(kb, (1, fan_out), jnp.float32, -scale, scale)
    return W, b

  params = {}
  params["value_w"], params["value_b"] = lin(keys[3], D, D)
  params["so_w"], params["so_b"] = lin(keys[4], D, H * P)
  params["aw_w"], params["aw_b"] = lin(keys[5], D, H * P)
  params["out_w"], params["out_b"] = lin(keys[6], D, D)
  params["fc1_w"], params["fc1_b"] = lin(keys[7], D, FF)
  params["fc2_w"], params["fc2_b"] = lin(keys[8], FF, D)
  params["ln1_g"] = 1.0 + 0.1 * jax.random.normal(keys[9], (1, D), jnp.float32)
  params["ln1_b"] = 0.1 * jax.random.normal(keys[10], (1, D), jnp.float32)
  params["ln2_g"] = 1.0 + 0.1 * jax.random.normal(keys[11], (1, D), jnp.float32)
  params["ln2_b"] = jnp.zeros((1, D), jnp.float32)

  out, attn = grounded_audio_deformable_layer(
      hs, mask_bool, pos, ref_pts, params, num_heads=H, n_points=P, eps=eps)
  out = jax.block_until_ready(out)
  attn = jax.block_until_ready(attn)

  ref_out, ref_attn = reference_layer(hs, mask_bool, pos, ref_pts, params, H, P, eps)
  np.testing.assert_allclose(np.asarray(out.astype(jnp.float32)), np.asarray(ref_out),
                             rtol=3e-2, atol=3e-2)
  np.testing.assert_allclose(np.asarray(attn.astype(jnp.float32)), np.asarray(ref_attn),
                             rtol=2e-2, atol=2e-2)
  print("KERNEL_OK")
</pallas_src>

<mosaic_0001>
module attributes {stable_mosaic.version = 11 : i64} {
  func.func @_deformable_layer_kernel(%arg0: i32, %arg1: i32, %arg2: memref<1x16x32xbf16, #tpu.memory_space<vmem>>, %arg3: memref<1x16x32xbf16, #tpu.memory_space<vmem>>, %arg4: memref<1x16x1xf32, #tpu.memory_space<vmem>>, %arg5: memref<2x1xf32, #tpu.memory_space<smem>>, %arg6: memref<1x8x32xbf16, #tpu.memory_space<vmem>>, %arg7: memref<16x16xbf16, #tpu.memory_space<vmem>>, %arg8: memref<16x8xbf16, #tpu.memory_space<vmem>>, %arg9: memref<32x32xbf16, #tpu.memory_space<vmem>>, %arg10: memref<1x32xf32, #tpu.memory_space<vmem>>, %arg11: memref<1x32xf32, #tpu.memory_space<vmem>>, %arg12: memref<1x32xf32, #tpu.memory_space<vmem>>, %arg13: memref<1x32xf32, #tpu.memory_space<vmem>>, %arg14: memref<32x64xbf16, #tpu.memory_space<vmem>>, %arg15: memref<1x64xf32, #tpu.memory_space<vmem>>, %arg16: memref<64x32xbf16, #tpu.memory_space<vmem>>, %arg17: memref<1x32xf32, #tpu.memory_space<vmem>>, %arg18: memref<1x32xf32, #tpu.memory_space<vmem>>, %arg19: memref<1x32xf32, #tpu.memory_space<vmem>>, %arg20: memref<1x16x32xbf16, #tpu.memory_space<vmem>>, %arg21: memref<1x16x16xbf16, #tpu.memory_space<vmem>>) attributes {dimension_semantics = [#tpu.dimension_semantics<parallel>, #tpu.dimension_semantics<parallel>], iteration_bounds = array<i64: 2, 1>, scalar_prefetch = 0 : i64, scratch_operands = 0 : i64, tpu.core_type = #tpu.core_type<tc>, window_params = [{transform_indices = @transform_0, window_bounds = array<i64: 1, 16, 32>}, {transform_indices = @transform_1, window_bounds = array<i64: 1, 16, 32>}, {transform_indices = @transform_2, window_bounds = array<i64: 1, 16, 1>}, {transform_indices = @transform_3, window_bounds = array<i64: 2, 1>}, {transform_indices = @transform_4, window_bounds = array<i64: 1, 8, 32>}, {pipeline_mode = #tpu.pipeline_mode<synchronous>, transform_indices = @transform_5, window_bounds = array<i64: 16, 16>}, {pipeline_mode = #tpu.pipeline_mode<synchronous>, transform_indices = @transform_6, window_bounds = array<i64: 16, 8>}, {pipeline_mode = #tpu.pipeline_mode<synchronous>, transform_indices = @transform_7, window_bounds = array<i64: 32, 32>}, {pipeline_mode = #tpu.pipeline_mode<synchronous>, transform_indices = @transform_8, window_bounds = array<i64: 1, 32>}, {pipeline_mode = #tpu.pipeline_mode<synchronous>, transform_indices = @transform_9, window_bounds = array<i64: 1, 32>}, {pipeline_mode = #tpu.pipeline_mode<synchronous>, transform_indices = @transform_10, window_bounds = array<i64: 1, 32>}, {pipeline_mode = #tpu.pipeline_mode<synchronous>, transform_indices = @transform_11, window_bounds = array<i64: 1, 32>}, {pipeline_mode = #tpu.pipeline_mode<synchronous>, transform_indices = @transform_12, window_bounds = array<i64: 32, 64>}, {pipeline_mode = #tpu.pipeline_mode<synchronous>, transform_indices = @transform_13, window_bounds = array<i64: 1, 64>}, {pipeline_mode = #tpu.pipeline_mode<synchronous>, transform_indices = @transform_14, window_bounds = array<i64: 64, 32>}, {pipeline_mode = #tpu.pipeline_mode<synchronous>, transform_indices = @transform_15, window_bounds = array<i64: 1, 32>}, {pipeline_mode = #tpu.pipeline_mode<synchronous>, transform_indices = @transform_16, window_bounds = array<i64: 1, 32>}, {pipeline_mode = #tpu.pipeline_mode<synchronous>, transform_indices = @transform_17, window_bounds = array<i64: 1, 32>}, {transform_indices = @transform_18, window_bounds = array<i64: 1, 16, 32>}, {transform_indices = @transform_19, window_bounds = array<i64: 1, 16, 16>}]} {
    %c0 = arith.constant 0 : index
    %c0_0 = arith.constant 0 : index
    %c0_1 = arith.constant 0 : index
    %0 = vector.load %arg2[%c0, %c0_0, %c0_1] : memref<1x16x32xbf16, #tpu.memory_space<vmem>>, vector<1x16x32xbf16>
    %1 = vector.shape_cast %0 : vector<1x16x32xbf16> to vector<16x32xbf16>
    %c0_2 = arith.constant 0 : index
    %c0_3 = arith.constant 0 : index
    %c0_4 = arith.constant 0 : index
    %2 = vector.load %arg3[%c0_2, %c0_3, %c0_4] : memref<1x16x32xbf16, #tpu.memory_space<vmem>>, vector<1x16x32xbf16>
    %3 = vector.shape_cast %2 : vector<1x16x32xbf16> to vector<16x32xbf16>
    %4 = arith.addf %1, %3 : vector<16x32xbf16>
    %c0_5 = arith.constant 0 : index
    %c0_6 = arith.constant 0 : index
    %5 = vector.load %arg9[%c0_5, %c0_6] : memref<32x32xbf16, #tpu.memory_space<vmem>>, vector<32x32xbf16>
    %cst = arith.constant dense<0.000000e+00> : vector<16x32xf32>
    %6 = tpu.matmul %4, %5, %cst {dimension_numbers = #tpu.dot_dimension_numbers<[1], [0], [0], [1], [0, 0, 1, 1], [], []>} : vector<16x32xbf16>, vector<32x32xbf16>, vector<16x32xf32> -> vector<16x32xf32>
    %c0_7 = arith.constant 0 : index
    %c0_8 = arith.constant 0 : index
    %7 = vector.load %arg10[%c0_7, %c0_8] : memref<1x32xf32, #tpu.memory_space<vmem>>, vector<1x32xf32>
    %8 = vector.broadcast %7 : vector<1x32xf32> to vector<16x32xf32>
    %9 = arith.addf %6, %8 : vector<16x32xf32>
    %10 = vector.extract_strided_slice %9 {offsets = [0, 0], sizes = [16, 16], strides = [1, 1]} : vector<16x32xf32> to vector<16x16xf32>
    %11 = vector.extract_strided_slice %9 {offsets = [0, 16], sizes = [16, 16], strides = [1, 1]} : vector<16x32xf32> to vector<16x16xf32>
    %12 = arith.index_cast %arg0 : i32 to index
    %c0_9 = arith.constant 0 : index
    %13 = memref.load %arg5[%12, %c0_9] : memref<2x1xf32, #tpu.memory_space<smem>>
    %c0_10 = arith.constant 0 : index
    %c0_11 = arith.constant 0 : index
    %c0_12 = arith.constant 0 : index
    %14 = vector.load %arg4[%c0_10, %c0_11, %c0_12] : memref<1x16x1xf32, #tpu.memory_space<vmem>>, vector<1x16x1xf32>
    %15 = vector.shape_cast %14 : vector<1x16x1xf32> to vector<16x1xf32>
    %16 = vector.broadcast %13 : f32 to vector<16x16xf32>
    %17 = arith.mulf %10, %16 : vector<16x16xf32>
    %18 = vector.broadcast %15 : vector<16x1xf32> to vector<16x16xf32>
    %19 = arith.addf %18, %17 : vector<16x16xf32>
    %cst_13 = arith.constant 5.000000e-01 : f32
    %20 = vector.broadcast %cst_13 : f32 to vector<16x16xf32>
    %21 = arith.subf %19, %20 : vector<16x16xf32>
    %22 = math.floor %21 : vector<16x16xf32>
    %23 = arith.subf %21, %22 : vector<16x16xf32>
    %cst_14 = arith.constant 0.000000e+00 : f32
    %24 = vector.broadcast %cst_14 : f32 to vector<16x16xf32>
    %25 = arith.cmpf oeq, %22, %24 : vector<16x16xf32>
    %cst_15 = arith.constant 1.000000e+00 : f32
    %26 = vector.broadcast %cst_15 : f32 to vector<16x16xf32>
    %27 = arith.subf %26, %23 : vector<16x16xf32>
    %cst_16 = arith.constant 0.000000e+00 : f32
    %28 = vector.broadcast %cst_16 : f32 to vector<16x16xf32>
    %29 = arith.select %25, %27, %28 : vector<16x16xi1>, vector<16x16xf32>
    %cst_17 = arith.constant -1.000000e+00 : f32
    %30 = vector.broadcast %cst_17 : f32 to vector<16x16xf32>
    %31 = arith.cmpf oeq, %22, %30 : vector<16x16xf32>
    %cst_18 = arith.constant 0.000000e+00 : f32
    %32 = vector.broadcast %cst_18 : f32 to vector<16x16xf32>
    %33 = arith.select %31, %23, %32 : vector<16x16xi1>, vector<16x16xf32>
    %34 = arith.addf %29, %33 : vector<16x16xf32>
    %cst_19 = arith.constant dense<0xFF800000> : vector<16xf32>
    %35 = vector.multi_reduction <maximumf>, %11, %cst_19 [1] : vector<16x16xf32> to vector<16xf32>
    %36 = vector.shape_cast %35 : vector<16xf32> to vector<16x1xf32>
    %37 = vector.broadcast %36 : vector<16x1xf32> to vector<16x16xf32>
    %38 = arith.subf %11, %37 : vector<16x16xf32>
    %39 = math.exp %38 : vector<16x16xf32>
    %40 = arith.truncf %39 : vector<16x16xf32> to vector<16x16xbf16>
    %c0_20 = arith.constant 0 : index
    %c0_21 = arith.constant 0 : index
    %41 = vector.load %arg7[%c0_20, %c0_21] : memref<16x16xbf16, #tpu.memory_space<vmem>>, vector<16x16xbf16>
    %cst_22 = arith.constant dense<0.000000e+00> : vector<16x16xf32>
    %42 = tpu.matmul %40, %41, %cst_22 {dimension_numbers = #tpu.dot_dimension_numbers<[1], [0], [0], [1], [0, 0, 1, 1], [], []>} : vector<16x16xbf16>, vector<16x16xbf16>, vector<16x16xf32> -> vector<16x16xf32>
    %cst_23 = arith.constant 1.000000e-30 : f32
    %43 = vector.broadcast %cst_23 : f32 to vector<16x16xf32>
    %44 = arith.maximumf %42, %43 : vector<16x16xf32>
    %45 = tpu.reciprocal %44 {approx = true} : vector<16x16xf32> -> vector<16x16xf32>
    %46 = arith.mulf %39, %45 : vector<16x16xf32>
    %47 = arith.truncf %46 : vector<16x16xf32> to vector<16x16xbf16>
    %48 = vector.shape_cast %47 : vector<16x16xbf16> to vector<1x16x16xbf16>
    %c0_24 = arith.constant 0 : index
    %c0_25 = arith.constant 0 : index
    %c0_26 = arith.constant 0 : index
    %49 = vector.load %arg21[%c0_24, %c0_25, %c0_26] : memref<1x16x16xbf16, #tpu.memory_space<vmem>>, vector<1x16x16xbf16>
    tpu.vector_store %arg21[%c0_24, %c0_25, %c0_26], %48 {strides = array<i32>} : memref<1x16x16xbf16, #tpu.memory_space<vmem>>, vector<1x16x16xbf16>,
    %50 = arith.mulf %46, %34 : vector<16x16xf32>
    %51 = arith.truncf %50 : vector<16x16xf32> to vector<16x16xbf16>
    %c0_27 = arith.constant 0 : index
    %c0_28 = arith.constant 0 : index
    %52 = vector.load %arg8[%c0_27, %c0_28] : memref<16x8xbf16, #tpu.memory_space<vmem>>, vector<16x8xbf16>
    %cst_29 = arith.constant dense<0.000000e+00> : vector<16x8xf32>
    %53 = tpu.matmul %51, %52, %cst_29 {dimension_numbers = #tpu.dot_dimension_numbers<[1], [0], [0], [1], [0, 0, 1, 1], [], []>} : vector<16x16xbf16>, vector<16x8xbf16>, vector<16x8xf32> -> vector<16x8xf32>
    %54 = arith.truncf %53 : vector<16x8xf32> to vector<16x8xbf16>
    %c0_30 = arith.constant 0 : index
    %c0_31 = arith.constant 0 : index
    %c0_32 = arith.constant 0 : index
    %55 = vector.load %arg6[%c0_30, %c0_31, %c0_32] : memref<1x8x32xbf16, #tpu.memory_space<vmem>>, vector<1x8x32xbf16>
    %56 = vector.shape_cast %55 : vector<1x8x32xbf16> to vector<8x32xbf16>
    %cst_33 = arith.constant dense<0.000000e+00> : vector<16x32xf32>
    %57 = tpu.matmul %54, %56, %cst_33 {dimension_numbers = #tpu.dot_dimension_numbers<[1], [0], [0], [1], [0, 0, 1, 1], [], []>} : vector<16x8xbf16>, vector<8x32xbf16>, vector<16x32xf32> -> vector<16x32xf32>
    %c0_34 = arith.constant 0 : index
    %c0_35 = arith.constant 0 : index
    %58 = vector.load %arg11[%c0_34, %c0_35] : memref<1x32xf32, #tpu.memory_space<vmem>>, vector<1x32xf32>
    %59 = vector.broadcast %58 : vector<1x32xf32> to vector<16x32xf32>
    %60 = arith.addf %57, %59 : vector<16x32xf32>
    %61 = arith.extf %1 : vector<16x32xbf16> to vector<16x32xf32>
    %62 = arith.addf %61, %60 : vector<16x32xf32>
    %cst_36 = arith.constant dense<0.000000e+00> : vector<16xf32>
    %63 = vector.multi_reduction <add>, %62, %cst_36 [1] : vector<16x32xf32> to vector<16xf32>
    %64 = vector.shape_cast %63 : vector<16xf32> to vector<16x1xf32>
    %cst_37 = arith.constant 3.200000e+01 : f32
    %65 = vector.broadcast %cst_37 : f32 to vector<16x1xf32>
    %66 = arith.divf %64, %65 : vector<16x1xf32>
    %67 = vector.broadcast %66 : vector<16x1xf32> to vector<16x32xf32>
    %68 = arith.subf %62, %67 : vector<16x32xf32>
    %69 = vector.broadcast %66 : vector<16x1xf32> to vector<16x32xf32>
    %70 = arith.subf %62, %69 : vector<16x32xf32>
    %71 = arith.mulf %68, %70 : vector<16x32xf32>
    %cst_38 = arith.constant dense<0.000000e+00> : vector<16xf32>
    %72 = vector.multi_reduction <add>, %71, %cst_38 [1] : vector<16x32xf32> to vector<16xf32>
    %73 = vector.shape_cast %72 : vector<16xf32> to vector<16x1xf32>
    %cst_39 = arith.constant 3.200000e+01 : f32
    %74 = vector.broadcast %cst_39 : f32 to vector<16x1xf32>
    %75 = arith.divf %73, %74 : vector<16x1xf32>
    %76 = vector.broadcast %66 : vector<16x1xf32> to vector<16x32xf32>
    %77 = arith.subf %62, %76 : vector<16x32xf32>
    %cst_40 = arith.constant 9.99999974E-6 : f32
    %78 = vector.broadcast %cst_40 : f32 to vector<16x1xf32>
    %79 = arith.addf %75, %78 : vector<16x1xf32>
    %80 = math.rsqrt %79 : vector<16x1xf32>
    %81 = vector.broadcast %80 : vector<16x1xf32> to vector<16x32xf32>
    %82 = arith.mulf %77, %81 : vector<16x32xf32>
    %c0_41 = arith.constant 0 : index
    %c0_42 = arith.constant 0 : index
    %83 = vector.load %arg12[%c0_41, %c0_42] : memref<1x32xf32, #tpu.memory_space<vmem>>, vector<1x32xf32>
    %84 = vector.broadcast %83 : vector<1x32xf32> to vector<16x32xf32>
    %85 = arith.mulf %82, %84 : vector<16x32xf32>
    %c0_43 = arith.constant 0 : index
    %c0_44 = arith.constant 0 : index
    %86 = vector.load %arg13[%c0_43, %c0_44] : memref<1x32xf32, #tpu.memory_space<vmem>>, vector<1x32xf32>
    %87 = vector.broadcast %86 : vector<1x32xf32> to vector<16x32xf32>
    %88 = arith.addf %85, %87 : vector<16x32xf32>
    %89 = arith.truncf %88 : vector<16x32xf32> to vector<16x32xbf16>
    %c0_45 = arith.constant 0 : index
    %c0_46 = arith.constant 0 : index
    %90 = vector.load %arg14[%c0_45, %c0_46] : memref<32x64xbf16, #tpu.memory_space<vmem>>, vector<32x64xbf16>
    %cst_47 = arith.constant dense<0.000000e+00> : vector<16x64xf32>
    %91 = tpu.matmul %89, %90, %cst_47 {dimension_numbers = #tpu.dot_dimension_numbers<[1], [0], [0], [1], [0, 0, 1, 1], [], []>} : vector<16x32xbf16>, vector<32x64xbf16>, vector<16x64xf32> -> vector<16x64xf32>
    %c0_48 = arith.constant 0 : index
    %c0_49 = arith.constant 0 : index
    %92 = vector.load %arg15[%c0_48, %c0_49] : memref<1x64xf32, #tpu.memory_space<vmem>>, vector<1x64xf32>
    %93 = vector.broadcast %92 : vector<1x64xf32> to vector<16x64xf32>
    %94 = arith.addf %91, %93 : vector<16x64xf32>
    %cst_50 = arith.constant 0.000000e+00 : f32
    %95 = vector.broadcast %cst_50 : f32 to vector<16x64xf32>
    %96 = arith.maximumf %94, %95 : vector<16x64xf32>
    %97 = arith.truncf %96 : vector<16x64xf32> to vector<16x64xbf16>
    %c0_51 = arith.constant 0 : index
    %c0_52 = arith.constant 0 : index
    %98 = vector.load %arg16[%c0_51, %c0_52] : memref<64x32xbf16, #tpu.memory_space<vmem>>, vector<64x32xbf16>
    %cst_53 = arith.constant dense<0.000000e+00> : vector<16x32xf32>
    %99 = tpu.matmul %97, %98, %cst_53 {dimension_numbers = #tpu.dot_dimension_numbers<[1], [0], [0], [1], [0, 0, 1, 1], [], []>} : vector<16x64xbf16>, vector<64x32xbf16>, vector<16x32xf32> -> vector<16x32xf32>
    %c0_54 = arith.constant 0 : index
    %c0_55 = arith.constant 0 : index
    %100 = vector.load %arg17[%c0_54, %c0_55] : memref<1x32xf32, #tpu.memory_space<vmem>>, vector<1x32xf32>
    %101 = vector.broadcast %100 : vector<1x32xf32> to vector<16x32xf32>
    %102 = arith.addf %99, %101 : vector<16x32xf32>
    %103 = arith.addf %88, %102 : vector<16x32xf32>
    %cst_56 = arith.constant dense<0.000000e+00> : vector<16xf32>
    %104 = vector.multi_reduction <add>, %103, %cst_56 [1] : vector<16x32xf32> to vector<16xf32>
    %105 = vector.shape_cast %104 : vector<16xf32> to vector<16x1xf32>
    %cst_57 = arith.constant 3.200000e+01 : f32
    %106 = vector.broadcast %cst_57 : f32 to vector<16x1xf32>
    %107 = arith.divf %105, %106 : vector<16x1xf32>
    %108 = vector.broadcast %107 : vector<16x1xf32> to vector<16x32xf32>
    %109 = arith.subf %103, %108 : vector<16x32xf32>
    %110 = vector.broadcast %107 : vector<16x1xf32> to vector<16x32xf32>
    %111 = arith.subf %103, %110 : vector<16x32xf32>
    %112 = arith.mulf %109, %111 : vector<16x32xf32>
    %cst_58 = arith.constant dense<0.000000e+00> : vector<16xf32>
    %113 = vector.multi_reduction <add>, %112, %cst_58 [1] : vector<16x32xf32> to vector<16xf32>
    %114 = vector.shape_cast %113 : vector<16xf32> to vector<16x1xf32>
    %cst_59 = arith.constant 3.200000e+01 : f32
    %115 = vector.broadcast %cst_59 : f32 to vector<16x1xf32>
    %116 = arith.divf %114, %115 : vector<16x1xf32>
    %117 = vector.broadcast %107 : vector<16x1xf32> to vector<16x32xf32>
    %118 = arith.subf %103, %117 : vector<16x32xf32>
    %cst_60 = arith.constant 9.99999974E-6 : f32
    %119 = vector.broadcast %cst_60 : f32 to vector<16x1xf32>
    %120 = arith.addf %116, %119 : vector<16x1xf32>
    %121 = math.rsqrt %120 : vector<16x1xf32>
    %122 = vector.broadcast %121 : vector<16x1xf32> to vector<16x32xf32>
    %123 = arith.mulf %118, %122 : vector<16x32xf32>
    %c0_61 = arith.constant 0 : index
    %c0_62 = arith.constant 0 : index
    %124 = vector.load %arg18[%c0_61, %c0_62] : memref<1x32xf32, #tpu.memory_space<vmem>>, vector<1x32xf32>
    %125 = vector.broadcast %124 : vector<1x32xf32> to vector<16x32xf32>
    %126 = arith.mulf %123, %125 : vector<16x32xf32>
    %c0_63 = arith.constant 0 : index
    %c0_64 = arith.constant 0 : index
    %127 = vector.load %arg19[%c0_63, %c0_64] : memref<1x32xf32, #tpu.memory_space<vmem>>, vector<1x32xf32>
    %128 = vector.broadcast %127 : vector<1x32xf32> to vector<16x32xf32>
    %129 = arith.addf %126, %128 : vector<16x32xf32>
    %130 = arith.truncf %129 : vector<16x32xf32> to vector<16x32xbf16>
    %131 = vector.shape_cast %130 : vector<16x32xbf16> to vector<1x16x32xbf16>
    %c0_65 = arith.constant 0 : index
    %c0_66 = arith.constant 0 : index
    %c0_67 = arith.constant 0 : index
    %132 = vector.load %arg20[%c0_65, %c0_66, %c0_67] : memref<1x16x32xbf16, #tpu.memory_space<vmem>>, vector<1x16x32xbf16>
    tpu.vector_store %arg20[%c0_65, %c0_66, %c0_67], %131 {strides = array<i32>} : memref<1x16x32xbf16, #tpu.memory_space<vmem>>, vector<1x16x32xbf16>,
    return
  }
  func.func @transform_0(%arg0: i32, %arg1: i32) -> (i32, i32, i32) {
    %c0_i32 = arith.constant 0 : i32
    %c0_i32_0 = arith.constant 0 : i32
    return %arg0, %arg1, %c0_i32 : i32, i32, i32
  }
  func.func @transform_1(%arg0: i32, %arg1: i32) -> (i32, i32, i32) {
    %c0_i32 = arith.constant 0 : i32
    %c0_i32_0 = arith.constant 0 : i32
    return %arg0, %arg1, %c0_i32 : i32, i32, i32
  }
  func.func @transform_2(%arg0: i32, %arg1: i32) -> (i32, i32, i32) {
    %c0_i32 = arith.constant 0 : i32
    %c0_i32_0 = arith.constant 0 : i32
    return %arg0, %arg1, %c0_i32 : i32, i32, i32
  }
  func.func @transform_3(%arg0: i32, %arg1: i32) -> (i32, i32) {
    %c0_i32 = arith.constant 0 : i32
    %c0_i32_0 = arith.constant 0 : i32
    %c0_i32_1 = arith.constant 0 : i32
    return %c0_i32, %c0_i32_0 : i32, i32
  }
  func.func @transform_4(%arg0: i32, %arg1: i32) -> (i32, i32, i32) {
    %c0_i32 = arith.constant 0 : i32
    %c0_i32_0 = arith.constant 0 : i32
    %c0_i32_1 = arith.constant 0 : i32
    return %arg0, %c0_i32, %c0_i32_0 : i32, i32, i32
  }
  func.func @transform_5(%arg0: i32, %arg1: i32) -> (i32, i32) {
    %c0_i32 = arith.constant 0 : i32
    %c0_i32_0 = arith.constant 0 : i32
    %c0_i32_1 = arith.constant 0 : i32
    return %c0_i32, %c0_i32_0 : i32, i32
  }
  func.func @transform_6(%arg0: i32, %arg1: i32) -> (i32, i32) {
    %c0_i32 = arith.constant 0 : i32
    %c0_i32_0 = arith.constant 0 : i32
    %c0_i32_1 = arith.constant 0 : i32
    return %c0_i32, %c0_i32_0 : i32, i32
  }
  func.func @transform_7(%arg0: i32, %arg1: i32) -> (i32, i32) {
    %c0_i32 = arith.constant 0 : i32
    %c0_i32_0 = arith.constant 0 : i32
    %c0_i32_1 = arith.constant 0 : i32
    return %c0_i32, %c0_i32_0 : i32, i32
  }
  func.func @transform_8(%arg0: i32, %arg1: i32) -> (i32, i32) {
    %c0_i32 = arith.constant 0 : i32
    %c0_i32_0 = arith.constant 0 : i32
    %c0_i32_1 = arith.constant 0 : i32
    return %c0_i32, %c0_i32_0 : i32, i32
  }
  func.func @transform_9(%arg0: i32, %arg1: i32) -> (i32, i32) {
    %c0_i32 = arith.constant 0 : i32
    %c0_i32_0 = arith.constant 0 : i32
    %c0_i32_1 = arith.constant 0 : i32
    return %c0_i32, %c0_i32_0 : i32, i32
  }
  func.func @transform_10(%arg0: i32, %arg1: i32) -> (i32, i32) {
    %c0_i32 = arith.constant 0 : i32
    %c0_i32_0 = arith.constant 0 : i32
    %c0_i32_1 = arith.constant 0 : i32
    return %c0_i32, %c0_i32_0 : i32, i32
  }
  func.func @transform_11(%arg0: i32, %arg1: i32) -> (i32, i32) {
    %c0_i32 = arith.constant 0 : i32
    %c0_i32_0 = arith.constant 0 : i32
    %c0_i32_1 = arith.constant 0 : i32
    return %c0_i32, %c0_i32_0 : i32, i32
  }
  func.func @transform_12(%arg0: i32, %arg1: i32) -> (i32, i32) {
    %c0_i32 = arith.constant 0 : i32
    %c0_i32_0 = arith.constant 0 : i32
    %c0_i32_1 = arith.constant 0 : i32
    return %c0_i32, %c0_i32_0 : i32, i32
  }
  func.func @transform_13(%arg0: i32, %arg1: i32) -> (i32, i32) {
    %c0_i32 = arith.constant 0 : i32
    %c0_i32_0 = arith.constant 0 : i32
    %c0_i32_1 = arith.constant 0 : i32
    return %c0_i32, %c0_i32_0 : i32, i32
  }
  func.func @transform_14(%arg0: i32, %arg1: i32) -> (i32, i32) {
    %c0_i32 = arith.constant 0 : i32
    %c0_i32_0 = arith.constant 0 : i32
    %c0_i32_1 = arith.constant 0 : i32
    return %c0_i32, %c0_i32_0 : i32, i32
  }
  func.func @transform_15(%arg0: i32, %arg1: i32) -> (i32, i32) {
    %c0_i32 = arith.constant 0 : i32
    %c0_i32_0 = arith.constant 0 : i32
    %c0_i32_1 = arith.constant 0 : i32
    return %c0_i32, %c0_i32_0 : i32, i32
  }
  func.func @transform_16(%arg0: i32, %arg1: i32) -> (i32, i32) {
    %c0_i32 = arith.constant 0 : i32
    %c0_i32_0 = arith.constant 0 : i32
    %c0_i32_1 = arith.constant 0 : i32
    return %c0_i32, %c0_i32_0 : i32, i32
  }
  func.func @transform_17(%arg0: i32, %arg1: i32) -> (i32, i32) {
    %c0_i32 = arith.constant 0 : i32
    %c0_i32_0 = arith.constant 0 : i32
    %c0_i32_1 = arith.constant 0 : i32
    return %c0_i32, %c0_i32_0 : i32, i32
  }
  func.func @transform_18(%arg0: i32, %arg1: i32) -> (i32, i32, i32) {
    %c0_i32 = arith.constant 0 : i32
    %c0_i32_0 = arith.constant 0 : i32
    return %arg0, %arg1, %c0_i32 : i32, i32, i32
  }
  func.func @transform_19(%arg0: i32, %arg1: i32) -> (i32, i32, i32) {
    %c0_i32 = arith.constant 0 : i32
    %c0_i32_0 = arith.constant 0 : i32
    return %arg0, %arg1, %c0_i32 : i32, i32, i32
  }
}

</mosaic_0001>

<llo_original>
// kernel: tpu_custom_call.1
$region0: #{tpu_custom_call.1}
  #allocation0 [shape = 'u32[]', space=smem, size = 0x4, offset = 0x4, fixed_abs, tag = 'smem constant byte address 0x4 - core index']
  #allocation1 [shape = 'u32[72,128]{1,0:T(1,128)}', space=vmem, size = 0x9000, scoped, tag = 'internal scratch']
  %s0 = inlined_call_operand.vmem [shape: bf16[2,16,32], index: 0, kind: input, shape index: {}]
  %s1 = inlined_call_operand.vmem [shape: bf16[2,16,32], index: 1, kind: input, shape index: {}]
  %s2 = inlined_call_operand.vmem [shape: f32[2,16,1], index: 2, kind: input, shape index: {}]
  %s3 = inlined_call_operand.vmem [shape: f32[2,1], index: 3, kind: input, shape index: {}]
  %s4 = inlined_call_operand.vmem [shape: bf16[2,8,32], index: 4, kind: input, shape index: {}]
  %s5 = inlined_call_operand.hbm [shape: bf16[16,16], index: 5, kind: input, shape index: {}]
  %s6 = inlined_call_operand.vmem [shape: bf16[16,8], index: 6, kind: input, shape index: {}]
  %s7 = inlined_call_operand.vmem [shape: bf16[32,32], index: 7, kind: input, shape index: {}]
  %s8 = inlined_call_operand.vmem [shape: f32[1,32], index: 8, kind: input, shape index: {}]
  %s9 = inlined_call_operand.vmem [shape: f32[1,32], index: 9, kind: input, shape index: {}]
  %s10 = inlined_call_operand.vmem [shape: f32[1,32], index: 10, kind: input, shape index: {}]
  %s11 = inlined_call_operand.vmem [shape: f32[1,32], index: 11, kind: input, shape index: {}]
  %s12 = inlined_call_operand.vmem [shape: bf16[32,64], index: 12, kind: input, shape index: {}]
  %s13 = inlined_call_operand.vmem [shape: f32[1,64], index: 13, kind: input, shape index: {}]
  %s14 = inlined_call_operand.vmem [shape: bf16[64,32], index: 14, kind: input, shape index: {}]
  %s15 = inlined_call_operand.vmem [shape: f32[1,32], index: 15, kind: input, shape index: {}]
  %s16 = inlined_call_operand.vmem [shape: f32[1,32], index: 16, kind: input, shape index: {}]
  %s17 = inlined_call_operand.vmem [shape: f32[1,32], index: 17, kind: input, shape index: {}]
  %s18 = inlined_call_operand.hbm [shape: bf16[2,16,32], index: 18, kind: output, shape index: {0}]
  %s19 = inlined_call_operand.hbm [shape: bf16[2,16,16], index: 19, kind: output, shape index: {1}]
  %20 = xla_tuple %s18, %s19
  %s21 = sld [smem:[#allocation0]]
  $region121: #{tpu_custom_call.1} parent=0
    _
  %s23 = ssub.s32 1, %s21
  %s24 = scalar_select 0, %s23, %s21
  $region1: #{tpu_custom_call.1} parent=0
    #allocation2 [shape = 'u8[1024]{0}', space=smem, size = 0x400, scoped, tag = 'input window, operand 3, single buffered']
    #allocation3 [shape = 's32[2]{0}', space=sflag, size = 0x8, scoped, tag = 'scoped memory for tpu_custom_call.1']
    #allocation4 [shape = 's32[2]{0}', space=sflag, size = 0x8, scoped, tag = 'scoped memory for tpu_custom_call.1']
    #allocation5 [shape = 's32[2]{0}', space=sflag, size = 0x8, scoped, tag = 'scoped memory for tpu_custom_call.1']
    #allocation6 [shape = 'u8[4096]{0}', space=vmem, size = 0x1000, scoped, tag = 'input window, operand 5, single buffered']
    #allocation7 [shape = 'u8[8192]{0}', space=vmem, size = 0x2000, scoped, tag = 'output window, operand 0']
    #allocation8 [shape = 'u8[8192]{0}', space=vmem, size = 0x2000, scoped, tag = 'output window, operand 1']
    #allocation9 [shape = 's32[2]{0}', space=sflag, size = 0x8, scoped, tag = 'scoped memory for tpu_custom_call.1']
    %25 = vsyncpa [#allocation5], 0
    %26 = vsyncpa [#allocation3], 0
    %27 = vsyncpa [#allocation4], 0
    %s28 = scalar_lea.sflag [#allocation4], 1
    %29 = vsyncpa %s28, 0
    %30 = vsyncpa [#allocation9], 0
    %s31 = scalar_lea.sflag [#allocation9], 1
    %32 = vsyncpa %s31, 0
    loop: start=0, step=1, limit=4
    $region2: #{tpu_custom_call.1} parent=1 // loop_pre_header
      _
    $region3: #{tpu_custom_call.1} parent=1 // loop_header
      %s34 = sphi 0, %s38
      %p35 = scmp.ge.s32.totalorder %s34, 4
      %s41 = sphi 0, %s53
      %s42 = sphi 0, %s49
      %s43 = sphi 0, %s41
      %s44 = sphi 0, %s42
      %s45 = sphi 0, %s43
      %s46 = sphi 0, %s44
      %s58 = sphi 0, %s60
      %s61 = sphi 0, %s58
      %s62 = sphi 0, %s61
      %s78 = sphi 0, %s62
      %s86 = sphi 0, %s88
      %s89 = sphi 0, %s86
      %s90 = sphi 0, %s89
      %s106 = sphi 0, %s90
      %s114 = sphi 0, %s116
      %s117 = sphi 0, %s114
      %s118 = sphi 0, %s117
      %s134 = sphi 0, %s118
      %s138 = sphi 0, %s138
      %s140 = sphi 0, %s138
      %s141 = sphi 0, %s140
      %s155 = sphi 0, %s141
      %s161 = sphi 0, %s163
      %s164 = sphi 0, %s161
      %s165 = sphi 0, %s164
      %s181 = sphi 0, %s165
      %s185 = sphi 0, %s185
      %s187 = sphi 0, %s185
      %s188 = sphi 0, %s187
      %s202 = sphi 0, %s188
      %s206 = sphi 0, %s206
      %s208 = sphi 0, %s206
      %s209 = sphi 0, %s208
      %s223 = sphi 0, %s209
      %s227 = sphi 0, %s227
      %s229 = sphi 0, %s227
      %s230 = sphi 0, %s229
      %s244 = sphi 0, %s230
      %s248 = sphi 0, %s248
      %s250 = sphi 0, %s248
      %s251 = sphi 0, %s250
      %s265 = sphi 0, %s251
      %s269 = sphi 0, %s269
      %s271 = sphi 0, %s269
      %s272 = sphi 0, %s271
      %s286 = sphi 0, %s272
      %s290 = sphi 0, %s290
      %s292 = sphi 0, %s290
      %s293 = sphi 0, %s292
      %s307 = sphi 0, %s293
      %s311 = sphi 0, %s311
      %s313 = sphi 0, %s311
      %s314 = sphi 0, %s313
      %s328 = sphi 0, %s314
      %s332 = sphi 0, %s332
      %s334 = sphi 0, %s332
      %s335 = sphi 0, %s334
      %s349 = sphi 0, %s335
      %s353 = sphi 0, %s353
      %s355 = sphi 0, %s353
      %s356 = sphi 0, %s355
      %s370 = sphi 0, %s356
      %s374 = sphi 0, %s374
      %s376 = sphi 0, %s374
      %s377 = sphi 0, %s376
      %s391 = sphi 0, %s377
      %s395 = sphi 0, %s395
      %s397 = sphi 0, %s395
      %s398 = sphi 0, %s397
      %s412 = sphi 0, %s398
      %s416 = sphi 0, %s416
      %s418 = sphi 0, %s416
      %s419 = sphi 0, %s418
      %s433 = sphi 0, %s419
      %s437 = sphi 0, %s437
      %s439 = sphi 0, %s437
      %s440 = sphi 0, %s439
      %s454 = sphi 0, %s440
      %s462 = sphi 0, %s464
      %s465 = sphi 0, %s462
      %s466 = sphi 0, %s465
      %s482 = sphi 0, %s466
      %s490 = sphi 0, %s492
      %s493 = sphi 0, %s490
      %s494 = sphi 0, %s493
      %s510 = sphi 0, %s494
    $region4: #{tpu_custom_call.1} parent=1 // loop_header_branch
      %37 = sbr.rel (%p35) target = $region8
    $region5: #{tpu_custom_call.1} parent=1 // loop_body
      %s39 = ssub.s32 %s34, 1
      %s40 = ssub.s32 %s34, 2
      %s47 = sadd.s32 1, %s42
      %p48 = scmp.ge.s32.totalorder %s47, 1
      %s49 = scalar_select %p48, 0, %s47
      %s50 = sadd.s32 1, %s41
      %s51 = scalar_select %p48, %s50, %s41
      %p52 = scmp.ge.s32.totalorder %s51, 2
      %s53 = scalar_select %p52, 0, %s51
      %s54 = ssub.s32 %s41, %s53
      %s55 = ssub.s32 %s42, %s49
      %s56 = sor.u32 %s54, %s55
      %p57 = scmp.eq.s32.totalorder %s56, 0
      %s59 = sadd.s32 %s58, 1
      %s60 = scalar_select %p57, %s58, %s59
      %p63 = pneg %p57
      %p64 = scmp.eq.s32.totalorder %s34, 1
      %p65 = por %p63, %p64
      %p66 = scmp.ne.s32.totalorder %s58, %s61
      %p67 = scmp.eq.s32.totalorder %s34, 0
      %p68 = por %p66, %p67
      %p69 = scmp.ne.s32.totalorder %s58, %s61
      %p70 = scmp.eq.s32.totalorder %s39, 1
      %p71 = por %p69, %p70
      %p72 = scmp.ne.s32.totalorder %s61, %s62
      %p73 = scmp.eq.s32.totalorder %s39, 0
      %p74 = por %p72, %p73
      %p75 = scmp.ne.s32.totalorder %s61, %s62
      %p76 = scmp.eq.s32.totalorder %s40, 1
      %p77 = por %p75, %p76
      %p79 = scmp.ne.s32.totalorder %s62, %s78
      %p80 = scmp.eq.s32.totalorder %s40, 0
      %p81 = por %p79, %p80
      %s82 = ssub.s32 %s41, %s53
      %s83 = ssub.s32 %s42, %s49
      %s84 = sor.u32 %s82, %s83
      %p85 = scmp.eq.s32.totalorder %s84, 0
      %s87 = sadd.s32 %s86, 1
      %s88 = scalar_select %p85, %s86, %s87
      %p91 = pneg %p85
      %p92 = scmp.eq.s32.totalorder %s34, 1
      %p93 = por %p91, %p92
      %p94 = scmp.ne.s32.totalorder %s86, %s89
      %p95 = scmp.eq.s32.totalorder %s34, 0
      %p96 = por %p94, %p95
      %p97 = scmp.ne.s32.totalorder %s86, %s89
      %p98 = scmp.eq.s32.totalorder %s39, 1
      %p99 = por %p97, %p98
      %p100 = scmp.ne.s32.totalorder %s89, %s90
      %p101 = scmp.eq.s32.totalorder %s39, 0
      %p102 = por %p100, %p101
      %p103 = scmp.ne.s32.totalorder %s89, %s90
      %p104 = scmp.eq.s32.totalorder %s40, 1
      %p105 = por %p103, %p104
      %p107 = scmp.ne.s32.totalorder %s90, %s106
      %p108 = scmp.eq.s32.totalorder %s40, 0
      %p109 = por %p107, %p108
      %s110 = ssub.s32 %s41, %s53
      %s111 = ssub.s32 %s42, %s49
      %s112 = sor.u32 %s110, %s111
      %p113 = scmp.eq.s32.totalorder %s112, 0
      %s115 = sadd.s32 %s114, 1
      %s116 = scalar_select %p113, %s114, %s115
      %p119 = pneg %p113
      %p120 = scmp.eq.s32.totalorder %s34, 1
      %p121 = por %p119, %p120
      %p122 = scmp.ne.s32.totalorder %s114, %s117
      %p123 = scmp.eq.s32.totalorder %s34, 0
      %p124 = por %p122, %p123
      %p125 = scmp.ne.s32.totalorder %s114, %s117
      %p126 = scmp.eq.s32.totalorder %s39, 1
      %p127 = por %p125, %p126
      %p128 = scmp.ne.s32.totalorder %s117, %s118
      %p129 = scmp.eq.s32.totalorder %s39, 0
      %p130 = por %p128, %p129
      %p131 = scmp.ne.s32.totalorder %s117, %s118
      %p132 = scmp.eq.s32.totalorder %s40, 1
      %p133 = por %p131, %p132
      %p135 = scmp.ne.s32.totalorder %s118, %s134
      %p136 = scmp.eq.s32.totalorder %s40, 0
      %p137 = por %p135, %p136
      %s139 = sadd.s32 %s138, 1
      %p142 = scmp.eq.s32.totalorder %s34, 1
      %p143 = scmp.ne.s32.totalorder %s138, %s140
      %p144 = scmp.eq.s32.totalorder %s34, 0
      %p145 = por %p143, %p144
      %p146 = scmp.ne.s32.totalorder %s138, %s140
      %p147 = scmp.eq.s32.totalorder %s39, 1
      %p148 = por %p146, %p147
      %p149 = scmp.ne.s32.totalorder %s140, %s141
      %p150 = scmp.eq.s32.totalorder %s39, 0
      %p151 = por %p149, %p150
      %p152 = scmp.ne.s32.totalorder %s140, %s141
      %p153 = scmp.eq.s32.totalorder %s40, 1
      %p154 = por %p152, %p153
      %p156 = scmp.ne.s32.totalorder %s141, %s155
      %p157 = scmp.eq.s32.totalorder %s40, 0
      %p158 = por %p156, %p157
      %s159 = ssub.s32 %s41, %s53
      %p160 = scmp.eq.s32.totalorder %s159, 0
      %s162 = sadd.s32 %s161, 1
      %s163 = scalar_select %p160, %s161, %s162
      %p166 = pneg %p160
      %p167 = scmp.eq.s32.totalorder %s34, 1
      %p168 = por %p166, %p167
      %p169 = scmp.ne.s32.totalorder %s161, %s164
      %p170 = scmp.eq.s32.totalorder %s34, 0
      %p171 = por %p169, %p170
      %p172 = scmp.ne.s32.totalorder %s161, %s164
      %p173 = scmp.eq.s32.totalorder %s39, 1
      %p174 = por %p172, %p173
      %p175 = scmp.ne.s32.totalorder %s164, %s165
      %p176 = scmp.eq.s32.totalorder %s39, 0
      %p177 = por %p175, %p176
      %p178 = scmp.ne.s32.totalorder %s164, %s165
      %p179 = scmp.eq.s32.totalorder %s40, 1
      %p180 = por %p178, %p179
      %p182 = scmp.ne.s32.totalorder %s165, %s181
      %p183 = scmp.eq.s32.totalorder %s40, 0
      %p184 = por %p182, %p183
      %s186 = sadd.s32 %s185, 1
      %p189 = scmp.eq.s32.totalorder %s34, 1
      %p190 = scmp.ne.s32.totalorder %s185, %s187
      %p191 = scmp.eq.s32.totalorder %s34, 0
      %p192 = por %p190, %p191
      %p193 = scmp.ne.s32.totalorder %s185, %s187
      %p194 = scmp.eq.s32.totalorder %s39, 1
      %p195 = por %p193, %p194
      %p196 = scmp.ne.s32.totalorder %s187, %s188
      %p197 = scmp.eq.s32.totalorder %s39, 0
      %p198 = por %p196, %p197
      %p199 = scmp.ne.s32.totalorder %s187, %s188
      %p200 = scmp.eq.s32.totalorder %s40, 1
      %p201 = por %p199, %p200
      %p203 = scmp.ne.s32.totalorder %s188, %s202
      %p204 = scmp.eq.s32.totalorder %s40, 0
      %p205 = por %p203, %p204
      %s207 = sadd.s32 %s206, 1
      %p210 = scmp.eq.s32.totalorder %s34, 1
      %p211 = scmp.ne.s32.totalorder %s206, %s208
      %p212 = scmp.eq.s32.totalorder %s34, 0
      %p213 = por %p211, %p212
      %p214 = scmp.ne.s32.totalorder %s206, %s208
      %p215 = scmp.eq.s32.totalorder %s39, 1
      %p216 = por %p214, %p215
      %p217 = scmp.ne.s32.totalorder %s208, %s209
      %p218 = scmp.eq.s32.totalorder %s39, 0
      %p219 = por %p217, %p218
      %p220 = scmp.ne.s32.totalorder %s208, %s209
      %p221 = scmp.eq.s32.totalorder %s40, 1
      %p222 = por %p220, %p221
      %p224 = scmp.ne.s32.totalorder %s209, %s223
      %p225 = scmp.eq.s32.totalorder %s40, 0
      %p226 = por %p224, %p225
      %s228 = sadd.s32 %s227, 1
      %p231 = scmp.eq.s32.totalorder %s34, 1
      %p232 = scmp.ne.s32.totalorder %s227, %s229
      %p233 = scmp.eq.s32.totalorder %s34, 0
      %p234 = por %p232, %p233
      %p235 = scmp.ne.s32.totalorder %s227, %s229
      %p236 = scmp.eq.s32.totalorder %s39, 1
      %p237 = por %p235, %p236
      %p238 = scmp.ne.s32.totalorder %s229, %s230
      %p239 = scmp.eq.s32.totalorder %s39, 0
      %p240 = por %p238, %p239
      %p241 = scmp.ne.s32.totalorder %s229, %s230
      %p242 = scmp.eq.s32.totalorder %s40, 1
      %p243 = por %p241, %p242
      %p245 = scmp.ne.s32.totalorder %s230, %s244
      %p246 = scmp.eq.s32.totalorder %s40, 0
      %p247 = por %p245, %p246
      %s249 = sadd.s32 %s248, 1
      %p252 = scmp.eq.s32.totalorder %s34, 1
      %p253 = scmp.ne.s32.totalorder %s248, %s250
      %p254 = scmp.eq.s32.totalorder %s34, 0
      %p255 = por %p253, %p254
      %p256 = scmp.ne.s32.totalorder %s248, %s250
      %p257 = scmp.eq.s32.totalorder %s39, 1
      %p258 = por %p256, %p257
      %p259 = scmp.ne.s32.totalorder %s250, %s251
      %p260 = scmp.eq.s32.totalorder %s39, 0
      %p261 = por %p259, %p260
      %p262 = scmp.ne.s32.totalorder %s250, %s251
      %p263 = scmp.eq.s32.totalorder %s40, 1
      %p264 = por %p262, %p263
      %p266 = scmp.ne.s32.totalorder %s251, %s265
      %p267 = scmp.eq.s32.totalorder %s40, 0
      %p268 = por %p266, %p267
      %s270 = sadd.s32 %s269, 1
      %p273 = scmp.eq.s32.totalorder %s34, 1
      %p274 = scmp.ne.s32.totalorder %s269, %s271
      %p275 = scmp.eq.s32.totalorder %s34, 0
      %p276 = por %p274, %p275
      %p277 = scmp.ne.s32.totalorder %s269, %s271
      %p278 = scmp.eq.s32.totalorder %s39, 1
      %p279 = por %p277, %p278
      %p280 = scmp.ne.s32.totalorder %s271, %s272
      %p281 = scmp.eq.s32.totalorder %s39, 0
      %p282 = por %p280, %p281
      %p283 = scmp.ne.s32.totalorder %s271, %s272
      %p284 = scmp.eq.s32.totalorder %s40, 1
      %p285 = por %p283, %p284
      %p287 = scmp.ne.s32.totalorder %s272, %s286
      %p288 = scmp.eq.s32.totalorder %s40, 0
      %p289 = por %p287, %p288
      %s291 = sadd.s32 %s290, 1
      %p294 = scmp.eq.s32.totalorder %s34, 1
      %p295 = scmp.ne.s32.totalorder %s290, %s292
      %p296 = scmp.eq.s32.totalorder %s34, 0
      %p297 = por %p295, %p296
      %p298 = scmp.ne.s32.totalorder %s290, %s292
      %p299 = scmp.eq.s32.totalorder %s39, 1
      %p300 = por %p298, %p299
      %p301 = scmp.ne.s32.totalorder %s292, %s293
      %p302 = scmp.eq.s32.totalorder %s39, 0
      %p303 = por %p301, %p302
      %p304 = scmp.ne.s32.totalorder %s292, %s293
      %p305 = scmp.eq.s32.totalorder %s40, 1
      %p306 = por %p304, %p305
      %p308 = scmp.ne.s32.totalorder %s293, %s307
      %p309 = scmp.eq.s32.totalorder %s40, 0
      %p310 = por %p308, %p309
      %s312 = sadd.s32 %s311, 1
      %p315 = scmp.eq.s32.totalorder %s34, 1
      %p316 = scmp.ne.s32.totalorder %s311, %s313
      %p317 = scmp.eq.s32.totalorder %s34, 0
      %p318 = por %p316, %p317
      %p319 = scmp.ne.s32.totalorder %s311, %s313
      %p320 = scmp.eq.s32.totalorder %s39, 1
      %p321 = por %p319, %p320
      %p322 = scmp.ne.s32.totalorder %s313, %s314
      %p323 = scmp.eq.s32.totalorder %s39, 0
      %p324 = por %p322, %p323
      %p325 = scmp.ne.s32.totalorder %s313, %s314
      %p326 = scmp.eq.s32.totalorder %s40, 1
      %p327 = por %p325, %p326
      %p329 = scmp.ne.s32.totalorder %s314, %s328
      %p330 = scmp.eq.s32.totalorder %s40, 0
      %p331 = por %p329, %p330
      %s333 = sadd.s32 %s332, 1
      %p336 = scmp.eq.s32.totalorder %s34, 1
      %p337 = scmp.ne.s32.totalorder %s332, %s334
      %p338 = scmp.eq.s32.totalorder %s34, 0
      %p339 = por %p337, %p338
      %p340 = scmp.ne.s32.totalorder %s332, %s334
      %p341 = scmp.eq.s32.totalorder %s39, 1
      %p342 = por %p340, %p341
      %p343 = scmp.ne.s32.totalorder %s334, %s335
      %p344 = scmp.eq.s32.totalorder %s39, 0
      %p345 = por %p343, %p344
      %p346 = scmp.ne.s32.totalorder %s334, %s335
      %p347 = scmp.eq.s32.totalorder %s40, 1
      %p348 = por %p346, %p347
      %p350 = scmp.ne.s32.totalorder %s335, %s349
      %p351 = scmp.eq.s32.totalorder %s40, 0
      %p352 = por %p350, %p351
      %s354 = sadd.s32 %s353, 1
      %p357 = scmp.eq.s32.totalorder %s34, 1
      %p358 = scmp.ne.s32.totalorder %s353, %s355
      %p359 = scmp.eq.s32.totalorder %s34, 0
      %p360 = por %p358, %p359
      %p361 = scmp.ne.s32.totalorder %s353, %s355
      %p362 = scmp.eq.s32.totalorder %s39, 1
      %p363 = por %p361, %p362
      %p364 = scmp.ne.s32.totalorder %s355, %s356
      %p365 = scmp.eq.s32.totalorder %s39, 0
      %p366 = por %p364, %p365
      %p367 = scmp.ne.s32.totalorder %s355, %s356
      %p368 = scmp.eq.s32.totalorder %s40, 1
      %p369 = por %p367, %p368
      %p371 = scmp.ne.s32.totalorder %s356, %s370
      %p372 = scmp.eq.s32.totalorder %s40, 0
      %p373 = por %p371, %p372
      %s375 = sadd.s32 %s374, 1
      %p378 = scmp.eq.s32.totalorder %s34, 1
      %p379 = scmp.ne.s32.totalorder %s374, %s376
      %p380 = scmp.eq.s32.totalorder %s34, 0
      %p381 = por %p379, %p380
      %p382 = scmp.ne.s32.totalorder %s374, %s376
      %p383 = scmp.eq.s32.totalorder %s39, 1
      %p384 = por %p382, %p383
      %p385 = scmp.ne.s32.totalorder %s376, %s377
      %p386 = scmp.eq.s32.totalorder %s39, 0
      %p387 = por %p385, %p386
      %p388 = scmp.ne.s32.totalorder %s376, %s377
      %p389 = scmp.eq.s32.totalorder %s40, 1
      %p390 = por %p388, %p389
      %p392 = scmp.ne.s32.totalorder %s377, %s391
      %p393 = scmp.eq.s32.totalorder %s40, 0
      %p394 = por %p392, %p393
      %s396 = sadd.s32 %s395, 1
      %p399 = scmp.eq.s32.totalorder %s34, 1
      %p400 = scmp.ne.s32.totalorder %s395, %s397
      %p401 = scmp.eq.s32.totalorder %s34, 0
      %p402 = por %p400, %p401
      %p403 = scmp.ne.s32.totalorder %s395, %s397
      %p404 = scmp.eq.s32.totalorder %s39, 1
      %p405 = por %p403, %p404
      %p406 = scmp.ne.s32.totalorder %s397, %s398
      %p407 = scmp.eq.s32.totalorder %s39, 0
      %p408 = por %p406, %p407
      %p409 = scmp.ne.s32.totalorder %s397, %s398
      %p410 = scmp.eq.s32.totalorder %s40, 1
      %p411 = por %p409, %p410
      %p413 = scmp.ne.s32.totalorder %s398, %s412
      %p414 = scmp.eq.s32.totalorder %s40, 0
      %p415 = por %p413, %p414
      %s417 = sadd.s32 %s416, 1
      %p420 = scmp.eq.s32.totalorder %s34, 1
      %p421 = scmp.ne.s32.totalorder %s416, %s418
      %p422 = scmp.eq.s32.totalorder %s34, 0
      %p423 = por %p421, %p422
      %p424 = scmp.ne.s32.totalorder %s416, %s418
      %p425 = scmp.eq.s32.totalorder %s39, 1
      %p426 = por %p424, %p425
      %p427 = scmp.ne.s32.totalorder %s418, %s419
      %p428 = scmp.eq.s32.totalorder %s39, 0
      %p429 = por %p427, %p428
      %p430 = scmp.ne.s32.totalorder %s418, %s419
      %p431 = scmp.eq.s32.totalorder %s40, 1
      %p432 = por %p430, %p431
      %p434 = scmp.ne.s32.totalorder %s419, %s433
      %p435 = scmp.eq.s32.totalorder %s40, 0
      %p436 = por %p434, %p435
      %s438 = sadd.s32 %s437, 1
      %p441 = scmp.eq.s32.totalorder %s34, 1
      %p442 = scmp.ne.s32.totalorder %s437, %s439
      %p443 = scmp.eq.s32.totalorder %s34, 0
      %p444 = por %p442, %p443
      %p445 = scmp.ne.s32.totalorder %s437, %s439
      %p446 = scmp.eq.s32.totalorder %s39, 1
      %p447 = por %p445, %p446
      %p448 = scmp.ne.s32.totalorder %s439, %s440
      %p449 = scmp.eq.s32.totalorder %s39, 0
      %p450 = por %p448, %p449
      %p451 = scmp.ne.s32.totalorder %s439, %s440
      %p452 = scmp.eq.s32.totalorder %s40, 1
      %p453 = por %p451, %p452
      %p455 = scmp.ne.s32.totalorder %s440, %s454
      %p456 = scmp.eq.s32.totalorder %s40, 0
      %p457 = por %p455, %p456
      %s458 = ssub.s32 %s41, %s53
      %s459 = ssub.s32 %s42, %s49
      %s460 = sor.u32 %s458, %s459
      %p461 = scmp.eq.s32.totalorder %s460, 0
      %s463 = sadd.s32 %s462, 1
      %s464 = scalar_select %p461, %s462, %s463
      %p467 = pneg %p461
      %p468 = scmp.eq.s32.totalorder %s34, 1
      %p469 = por %p467, %p468
      %p470 = scmp.ne.s32.totalorder %s462, %s465
      %p471 = scmp.eq.s32.totalorder %s34, 0
      %p472 = por %p470, %p471
      %p473 = scmp.ne.s32.totalorder %s462, %s465
      %p474 = scmp.eq.s32.totalorder %s39, 1
      %p475 = por %p473, %p474
      %p476 = scmp.ne.s32.totalorder %s465, %s466
      %p477 = scmp.eq.s32.totalorder %s39, 0
      %p478 = por %p476, %p477
      %p479 = scmp.ne.s32.totalorder %s465, %s466
      %p480 = scmp.eq.s32.totalorder %s40, 1
      %p481 = por %p479, %p480
      %p483 = scmp.ne.s32.totalorder %s466, %s482
      %p484 = scmp.eq.s32.totalorder %s40, 0
      %p485 = por %p483, %p484
      %s486 = ssub.s32 %s41, %s53
      %s487 = ssub.s32 %s42, %s49
      %s488 = sor.u32 %s486, %s487
      %p489 = scmp.eq.s32.totalorder %s488, 0
      %s491 = sadd.s32 %s490, 1
      %s492 = scalar_select %p489, %s490, %s491
      %p495 = pneg %p489
      %p496 = scmp.eq.s32.totalorder %s34, 1
      %p497 = por %p495, %p496
      %p498 = scmp.ne.s32.totalorder %s490, %s493
      %p499 = scmp.eq.s32.totalorder %s34, 0
      %p500 = por %p498, %p499
      %p501 = scmp.ne.s32.totalorder %s490, %s493
      %p502 = scmp.eq.s32.totalorder %s39, 1
      %p503 = por %p501, %p502
      %p504 = scmp.ne.s32.totalorder %s493, %s494
      %p505 = scmp.eq.s32.totalorder %s39, 0
      %p506 = por %p504, %p505
      %p507 = scmp.ne.s32.totalorder %s493, %s494
      %p508 = scmp.eq.s32.totalorder %s40, 1
      %p509 = por %p507, %p508
      %p511 = scmp.ne.s32.totalorder %s494, %s510
      %p512 = scmp.eq.s32.totalorder %s40, 0
      %p513 = por %p511, %p512
      %p514 = scmp.le.s32.totalorder 1, %s34
      %p515 = scmp.lt.s32.totalorder %s34, 3
      %p516 = pnand %p514, %p515
      %p517 = pneg %p516
      // Predicated region
      $region9: #{tpu_custom_call.1} parent=5 // pred_check
        _
      $region10: #{tpu_custom_call.1} parent=5 // pred_check_branch
        %519 = sbr.rel (%p516) target = $region12
      $region11: #{tpu_custom_call.1} parent=5 // pred_region
        %s520 = ssub.s32 %s34, 1
        // Predicated region
        $region13: #{tpu_custom_call.1} parent=11 // pred_check
          %p521 = pneg %p151
        $region14: #{tpu_custom_call.1} parent=11 // pred_check_branch
          %523 = sbr.rel (%p521) target = $region16
        $region15: #{tpu_custom_call.1} parent=11 // pred_region
          %525 = vsyncadd [#allocation5], 0
          %s527 = sshll.u32 %s3, 4
          %s528 = int_to_ptr.vmem [resolvable:$true] %s527
          %530 = dma.vmem_to_smem %s528, 32, [#allocation2], [#allocation5]
        $region16: #{tpu_custom_call.1} parent=11 // pred_fallthru
          _
        // Predicated region
        $region17: #{tpu_custom_call.1} parent=11 // pred_check
          %p531 = pneg %p198
        $region18: #{tpu_custom_call.1} parent=11 // pred_check_branch
          %533 = sbr.rel (%p531) target = $region20
        $region19: #{tpu_custom_call.1} parent=11 // pred_region
          %535 = vsyncadd [#allocation3], 0
          %s536 = sshll.u32 %s5, 4
          %s537 = int_to_ptr.hbm [resolvable:$true] %s536
          %s538 = sshll.u32 [#allocation6], 4
          %s539 = int_to_ptr.vmem [resolvable:$true] %s538
          %544 = dma.hbm_to_vmem [thread:$0]  %s537, 128, %s539, [#allocation3], 64, 64, 4
        $region20: #{tpu_custom_call.1} parent=11 // pred_fallthru
          _
        // Predicated region
        $region21: #{tpu_custom_call.1} parent=11 // pred_check
          %p545 = pneg %p219
        $region22: #{tpu_custom_call.1} parent=11 // pred_check_branch
          %547 = sbr.rel (%p545) target = $region24
        $region23: #{tpu_custom_call.1} parent=11 // pred_region
          _
        $region24: #{tpu_custom_call.1} parent=11 // pred_fallthru
          _
        // Predicated region
        $region25: #{tpu_custom_call.1} parent=11 // pred_check
          %p548 = pneg %p240
        $region26: #{tpu_custom_call.1} parent=11 // pred_check_branch
          %550 = sbr.rel (%p548) target = $region28
        $region27: #{tpu_custom_call.1} parent=11 // pred_region
          _
        $region28: #{tpu_custom_call.1} parent=11 // pred_fallthru
          _
        // Predicated region
        $region29: #{tpu_custom_call.1} parent=11 // pred_check
          %p551 = pneg %p261
        $region30: #{tpu_custom_call.1} parent=11 // pred_check_branch
          %553 = sbr.rel (%p551) target = $region32
        $region31: #{tpu_custom_call.1} parent=11 // pred_region
          _
        $region32: #{tpu_custom_call.1} parent=11 // pred_fallthru
          _
        // Predicated region
        $region33: #{tpu_custom_call.1} parent=11 // pred_check
          %p554 = pneg %p282
        $region34: #{tpu_custom_call.1} parent=11 // pred_check_branch
          %556 = sbr.rel (%p554) target = $region36
        $region35: #{tpu_custom_call.1} parent=11 // pred_region
          _
        $region36: #{tpu_custom_call.1} parent=11 // pred_fallthru
          _
        // Predicated region
        $region37: #{tpu_custom_call.1} parent=11 // pred_check
          %p557 = pneg %p303
        $region38: #{tpu_custom_call.1} parent=11 // pred_check_branch
          %559 = sbr.rel (%p557) target = $region40
        $region39: #{tpu_custom_call.1} parent=11 // pred_region
          _
        $region40: #{tpu_custom_call.1} parent=11 // pred_fallthru
          _
        // Predicated region
        $region41: #{tpu_custom_call.1} parent=11 // pred_check
          %p560 = pneg %p324
        $region42: #{tpu_custom_call.1} parent=11 // pred_check_branch
          %562 = sbr.rel (%p560) target = $region44
        $region43: #{tpu_custom_call.1} parent=11 // pred_region
          _
        $region44: #{tpu_custom_call.1} parent=11 // pred_fallthru
          _
        // Predicated region
        $region45: #{tpu_custom_call.1} parent=11 // pred_check
          %p563 = pneg %p345
        $region46: #{tpu_custom_call.1} parent=11 // pred_check_branch
          %565 = sbr.rel (%p563) target = $region48
        $region47: #{tpu_custom_call.1} parent=11 // pred_region
          _
        $region48: #{tpu_custom_call.1} parent=11 // pred_fallthru
          _
        // Predicated region
        $region49: #{tpu_custom_call.1} parent=11 // pred_check
          %p566 = pneg %p366
        $region50: #{tpu_custom_call.1} parent=11 // pred_check_branch
          %568 = sbr.rel (%p566) target = $region52
        $region51: #{tpu_custom_call.1} parent=11 // pred_region
          _
        $region52: #{tpu_custom_call.1} parent=11 // pred_fallthru
          _
        // Predicated region
        $region53: #{tpu_custom_call.1} parent=11 // pred_check
          %p569 = pneg %p387
        $region54: #{tpu_custom_call.1} parent=11 // pred_check_branch
          %571 = sbr.rel (%p569) target = $region56
        $region55: #{tpu_custom_call.1} parent=11 // pred_region
          _
        $region56: #{tpu_custom_call.1} parent=11 // pred_fallthru
          _
        // Predicated region
        $region57: #{tpu_custom_call.1} parent=11 // pred_check
          %p572 = pneg %p408
        $region58: #{tpu_custom_call.1} parent=11 // pred_check_branch
          %574 = sbr.rel (%p572) target = $region60
        $region59: #{tpu_custom_call.1} parent=11 // pred_region
          _
        $region60: #{tpu_custom_call.1} parent=11 // pred_fallthru
          _
        // Predicated region
        $region61: #{tpu_custom_call.1} parent=11 // pred_check
          %p575 = pneg %p429
        $region62: #{tpu_custom_call.1} parent=11 // pred_check_branch
          %577 = sbr.rel (%p575) target = $region64
        $region63: #{tpu_custom_call.1} parent=11 // pred_region
          _
        $region64: #{tpu_custom_call.1} parent=11 // pred_fallthru
          _
        // Predicated region
        $region65: #{tpu_custom_call.1} parent=11 // pred_check
          %p578 = pneg %p450
        $region66: #{tpu_custom_call.1} parent=11 // pred_check_branch
          %580 = sbr.rel (%p578) target = $region68
        $region67: #{tpu_custom_call.1} parent=11 // pred_region
          _
        $region68: #{tpu_custom_call.1} parent=11 // pred_fallthru
          _
      $region12: #{tpu_custom_call.1} parent=5 // pred_fallthru
        _
      %p581 = scmp.lt.s32.totalorder %s34, 2
      // Predicated region
      $region69: #{tpu_custom_call.1} parent=5 // pred_check
        %p582 = pneg %p581
      $region70: #{tpu_custom_call.1} parent=5 // pred_check_branch
        %584 = sbr.rel (%p582) target = $region72
      $region71: #{tpu_custom_call.1} parent=5 // pred_region
        // Predicated region
        $region73: #{tpu_custom_call.1} parent=71 // pred_check
          %p585 = pneg %p68
        $region74: #{tpu_custom_call.1} parent=71 // pred_check_branch
          %587 = sbr.rel (%p585) target = $region76
        $region75: #{tpu_custom_call.1} parent=71 // pred_region
          %s588 = smul.u32 2, %s42
          %p589 = scmp.lt.s32.totalorder %s41, 1
          %s590 = scalar_select %p589, %s41, 1
          %p591 = scmp.lt.s32.totalorder %s588, 1
          %s592 = scalar_select %p591, %s588, 1
          %s593 = smul.addr %s590, 2
          %s594 = sadd.s32 %s592, %s593
          %s595 = smul.addr %s594, 4
          %s596 = scalar_lea.vmem %s0, %s595
          %s597 = smul.u32 2, %s42
        $region76: #{tpu_custom_call.1} parent=71 // pred_fallthru
          _
        // Predicated region
        $region77: #{tpu_custom_call.1} parent=71 // pred_check
          %p598 = pneg %p96
        $region78: #{tpu_custom_call.1} parent=71 // pred_check_branch
          %600 = sbr.rel (%p598) target = $region80
        $region79: #{tpu_custom_call.1} parent=71 // pred_region
          %s601 = smul.u32 2, %s42
          %p602 = scmp.lt.s32.totalorder %s41, 1
          %s603 = scalar_select %p602, %s41, 1
          %p604 = scmp.lt.s32.totalorder %s601, 1
          %s605 = scalar_select %p604, %s601, 1
          %s606 = smul.addr %s603, 2
          %s607 = sadd.s32 %s605, %s606
          %s608 = smul.addr %s607, 4
          %s609 = scalar_lea.vmem %s1, %s608
          %s610 = smul.u32 2, %s42
        $region80: #{tpu_custom_call.1} parent=71 // pred_fallthru
          _
        // Predicated region
        $region81: #{tpu_custom_call.1} parent=71 // pred_check
          %p611 = pneg %p124
        $region82: #{tpu_custom_call.1} parent=71 // pred_check_branch
          %613 = sbr.rel (%p611) target = $region84
        $region83: #{tpu_custom_call.1} parent=71 // pred_region
          %s614 = smul.u32 2, %s42
          %p615 = scmp.lt.s32.totalorder %s41, 1
          %s616 = scalar_select %p615, %s41, 1
          %p617 = scmp.lt.s32.totalorder %s614, 1
          %s618 = scalar_select %p617, %s614, 1
          %s619 = smul.addr %s616, 2
          %s620 = sadd.s32 %s618, %s619
          %s621 = smul.addr %s620, 8
          %s622 = scalar_lea.vmem %s2, %s621
          %s623 = smul.u32 2, %s42
        $region84: #{tpu_custom_call.1} parent=71 // pred_fallthru
          _
        // Predicated region
        $region85: #{tpu_custom_call.1} parent=71 // pred_check
          %p624 = pneg %p171
        $region86: #{tpu_custom_call.1} parent=71 // pred_check_branch
          %626 = sbr.rel (%p624) target = $region88
        $region87: #{tpu_custom_call.1} parent=71 // pred_region
          %p627 = scmp.lt.s32.totalorder %s41, 1
          %s628 = scalar_select %p627, %s41, 1
          %s629 = smul.addr %s628, 4
          %s630 = scalar_lea.vmem %s4, %s629
        $region88: #{tpu_custom_call.1} parent=71 // pred_fallthru
          _
      $region72: #{tpu_custom_call.1} parent=5 // pred_fallthru
        _
      %p631 = scmp.le.s32.totalorder 1, %s34
      %p632 = scmp.lt.s32.totalorder %s34, 3
      %p633 = pnand %p631, %p632
      %p634 = pneg %p633
      // Predicated region
      $region89: #{tpu_custom_call.1} parent=5 // pred_check
        _
      $region90: #{tpu_custom_call.1} parent=5 // pred_check_branch
        %636 = sbr.rel (%p633) target = $region92
      $region91: #{tpu_custom_call.1} parent=5 // pred_region
        %s637 = ssub.s32 %s34, 1
        // Predicated region
        $region93: #{tpu_custom_call.1} parent=91 // pred_check
          %p638 = pneg %p151
        $region94: #{tpu_custom_call.1} parent=91 // pred_check_branch
          %640 = sbr.rel (%p638) target = $region96
        $region95: #{tpu_custom_call.1} parent=91 // pred_region
          %642 = dma.done [#allocation5], 32
        $region96: #{tpu_custom_call.1} parent=91 // pred_fallthru
          _
        // Predicated region
        $region97: #{tpu_custom_call.1} parent=91 // pred_check
          %p643 = pneg %p198
        $region98: #{tpu_custom_call.1} parent=91 // pred_check_branch
          %645 = sbr.rel (%p643) target = $region100
        $region99: #{tpu_custom_call.1} parent=91 // pred_region
          %647 = dma.done [#allocation3], 128
        $region100: #{tpu_custom_call.1} parent=91 // pred_fallthru
          _
        %648 = sfence
        %s649 = smul.u32 2, %s44
        %p650 = scmp.lt.s32.totalorder %s43, 1
        %s651 = scalar_select %p650, %s43, 1
        %p652 = scmp.lt.s32.totalorder %s649, 1
        %s653 = scalar_select %p652, %s649, 1
        %s654 = smul.addr %s651, 2
        %s655 = sadd.s32 %s653, %s654
        %s656 = smul.addr %s655, 4
        %s657 = scalar_lea.vmem %s0, %s656
        %p658 = pneg %p74
        %p659 = pneg %p71
        %s660 = smul.u32 2, %s44
        %p661 = scmp.lt.s32.totalorder %s43, 1
        %s662 = scalar_select %p661, %s43, 1
        %p663 = scmp.lt.s32.totalorder %s660, 1
        %s664 = scalar_select %p663, %s660, 1
        %s665 = smul.addr %s662, 2
        %s666 = sadd.s32 %s664, %s665
        %s667 = smul.addr %s666, 4
        %s668 = scalar_lea.vmem %s1, %s667
        %p669 = pneg %p102
        %p670 = pneg %p99
        %s671 = smul.u32 2, %s44
        %p672 = scmp.lt.s32.totalorder %s43, 1
        %s673 = scalar_select %p672, %s43, 1
        %p674 = scmp.lt.s32.totalorder %s671, 1
        %s675 = scalar_select %p674, %s671, 1
        %s676 = smul.addr %s673, 2
        %s677 = sadd.s32 %s675, %s676
        %s678 = smul.addr %s677, 8
        %s679 = scalar_lea.vmem %s2, %s678
        %p680 = pneg %p130
        %p681 = pneg %p127
        %p682 = pneg %p151
        %p683 = pneg %p148
        %p684 = scmp.lt.s32.totalorder %s43, 1
        %s685 = scalar_select %p684, %s43, 1
        %s686 = smul.addr %s685, 4
        %s687 = scalar_lea.vmem %s4, %s686
        %p688 = pneg %p177
        %p689 = pneg %p174
        %p690 = pneg %p198
        %p691 = pneg %p195
        %p692 = pneg %p219
        %p693 = pneg %p216
        %p694 = pneg %p240
        %p695 = pneg %p237
        %p696 = pneg %p261
        %p697 = pneg %p258
        %p698 = pneg %p282
        %p699 = pneg %p279
        %p700 = pneg %p303
        %p701 = pneg %p300
        %p702 = pneg %p324
        %p703 = pneg %p321
        %p704 = pneg %p345
        %p705 = pneg %p342
        %p706 = pneg %p366
        %p707 = pneg %p363
        %p708 = pneg %p387
        %p709 = pneg %p384
        %p710 = pneg %p408
        %p711 = pneg %p405
        %p712 = pneg %p429
        %p713 = pneg %p426
        %p714 = pneg %p450
        %p715 = pneg %p447
        %p716 = pneg %p478
        %p717 = pneg %p475
        %s718 = sand.u32 %s465, 1
        %s719 = scalar_lea.sflag [#allocation4], %s718
        %s720 = sand.u32 %s465, 1
        %s721 = smul.addr %s720, 8
        %s722 = scalar_lea.vmem [#allocation7], %s721
        %p723 = pneg %p506
        %p724 = pneg %p503
        %s725 = sand.u32 %s493, 1
        %s726 = scalar_lea.sflag [#allocation9], %s725
        %s727 = sand.u32 %s493, 1
        %s728 = smul.addr %s727, 8
        %s729 = scalar_lea.vmem [#allocation8], %s728
        %s730 = smul.u32 2, %s44
        %p731 = scmp.lt.s32.totalorder %s43, 1
        %s732 = scalar_select %p731, %s43, 1
        %p733 = scmp.lt.s32.totalorder %s730, 1
        %s734 = scalar_select %p733, %s730, 1
        %s735 = smul.addr %s732, 2
        %s736 = sadd.s32 %s734, %s735
        %s737 = smul.addr %s736, 4
        %s738 = scalar_lea.vmem %s0, %s737
        %s739 = smul.u32 2, %s44
        %s740 = smul.u32 2, %s44
        %p741 = scmp.lt.s32.totalorder %s43, 1
        %s742 = scalar_select %p741, %s43, 1
        %p743 = scmp.lt.s32.totalorder %s740, 1
        %s744 = scalar_select %p743, %s740, 1
        %s745 = smul.addr %s742, 2
        %s746 = sadd.s32 %s744, %s745
        %s747 = smul.addr %s746, 4
        %s748 = scalar_lea.vmem %s1, %s747
        %s749 = smul.u32 2, %s44
        %s750 = smul.u32 2, %s44
        %p751 = scmp.lt.s32.totalorder %s43, 1
        %s752 = scalar_select %p751, %s43, 1
        %p753 = scmp.lt.s32.totalorder %s750, 1
        %s754 = scalar_select %p753, %s750, 1
        %s755 = smul.addr %s752, 2
        %s756 = sadd.s32 %s754, %s755
        %s757 = smul.addr %s756, 8
        %s758 = scalar_lea.vmem %s2, %s757
        %s759 = smul.u32 2, %s44
        %p760 = scmp.lt.s32.totalorder %s43, 1
        %s761 = scalar_select %p760, %s43, 1
        %s762 = smul.addr %s761, 4
        %s763 = scalar_lea.vmem %s4, %s762
        %s764 = smul.u32 2, %s44
        %s765 = smul.u32 2, %s44
        %v767 = vld [vmem:[%s738] sm:$0xf]
        %v768 = vld [vmem:[%s738 + $0x4] sm:$0xf]
        %v769 = vld [vmem:[%s748] sm:$0xf]
        %v770 = vld [vmem:[%s748 + $0x4] sm:$0xf]
        %v771 = vunpack.c.l.bf16 %v767
        %v772 = vunpack.c.l.bf16 %v768
        %v773 = vunpack.c.l.bf16 %v769
        %v774 = vunpack.c.l.bf16 %v770
        %v775 = vadd.f32 %v771, %v773
        %v776 = vadd.f32 %v772, %v774
        %v777 = vpack.c.bf16 %v776, %v775
        %v778 = vld [vmem:[%s7] sm:$0xf]
        %v779 = vld [vmem:[%s7 + $0x4] sm:$0xf]
        %v780 = vld [vmem:[%s7 + $0x8] sm:$0xf]
        %v781 = vld [vmem:[%s7 + $0xc] sm:$0xf]
        %v782 = vld [vmem:[%s8] sm:$0x1]
        %v784 = vperm.slane %v782, 0
        %v790 = vunpack.c.l.b16 %v778
        %v791 = vunpack.c.l.b16 %v779
        %v792 = vunpack.c.l.b16 %v780
        %v793 = vunpack.c.l.b16 %v781
        %v794 = vpack.c.b16 %v791, %v790
        %v795 = vpack.c.b16 %v793, %v792
        %vm798 = vcmask 261120
        %v800 = vsel %vm798, %v777, 0
        %802 = vmatpush.bf16.msra.mxu0 0
        %803 = vmatpush.bf16.msra.mxu0 0
        %804 = vmatpush.bf16.msra.mxu0 0
        %805 = vmatpush.bf16.msra.mxu0 0
        %806 = vmatpush.bf16.msra.mxu0 0
        %807 = vmatpush.bf16.msra.mxu0 0
        %808 = vmatpush.bf16.msra.mxu0 %v795
        %809 = vmatpush.bf16.msra.mxu0 %v794
        %810 = vmatmul.bf16.gmra.mxu0 %v800
        %v811 = vpop.f32.mrf.mxu0
        %v812 = vadd.f32 %v784, %v811
        %v813 = vpop.f32.mrf.mxu0
        %v814 = vadd.f32 %v784, %v813
        %815 = vdwg.mxu0
        %s816 = smul.u32 %s43, 128
        %s817 = sld [smem:[#allocation2 + %s816]]
        %v818 = vld [vmem:[%s758] sm:$0xff]
        %v819 = vld [vmem:[%s758 + $0x8] sm:$0xff]
        %v820 = vstv %s817
        %v821 = vmul.f32 %v812, %v820
        %v822 = vmul.f32 %v814, %v820
        %824 = vset.pattern.permute.xlu0 0
        %825 = vperm.xlu0 %824, %v818
        %v826 = vpop.permute.xlu0 %825
        %829 = vset.pattern.permute.xlu0 0
        %830 = vperm.xlu0 %829, %v819
        %v831 = vpop.permute.xlu0 %830
        %v833 = vadd.f32 %v826, %v821
        %v834 = vadd.f32 %v831, %v822
        %v835 = vsub.f32 %v833, 0.5
        %v836 = vsub.f32 %v834, 0.5
        %v837 = vfloor.f32 %v835
        %v838 = vfloor.f32 %v836
        %v839 = vsub.f32 %v835, %v837
        %v840 = vsub.f32 %v836, %v838
        %vm841 = vcmp.eq.f32.partialorder %v837, 0.0
        %vm842 = vcmp.eq.f32.partialorder %v838, 0.0
        %v843 = vsub.f32 1.0, %v839
        %v844 = vsub.f32 1.0, %v840
        %v845 = vsel %vm841, %v843, 0.0
        %v846 = vsel %vm842, %v844, 0.0
        %vm847 = vcmp.eq.f32.partialorder %v837, -1.0
        %vm848 = vcmp.eq.f32.partialorder %v838, -1.0
        %v849 = vsel %vm847, %v839, 0.0
        %v850 = vsel %vm848, %v840, 0.0
        %v851 = vadd.f32 %v845, %v849
        %v852 = vadd.f32 %v846, %v850
        %vm853 = vcmask 261248
        %v854 = vsel %vm853, %v812, -inf
        %855 = vmax.xlane.f32.xlu0 %v854
        %v856 = vpop.xlane.xlu0 %855
        %v857 = vsel %vm853, %v814, -inf
        %858 = vmax.xlane.f32.xlu0 %v857
        %v859 = vpop.xlane.xlu0 %858
        %v860 = vsub.f32 %v812, %v856
        %v861 = vsub.f32 %v814, %v859
        %v862 = vmul.f32 %v860, 1.442695
        %v863 = vpow.pop %v862
        %v864 = vmul.f32 %v861, 1.442695
        %v865 = vpow.pop %v864
        %v866 = vpack.c.bf16 %v865, %v863
        %v867 = vld [vmem:[#allocation6] sm:$0xf]
        %v868 = vld [vmem:[#allocation6 + $0x4] sm:$0xf]
        %870 = vrot.lane.b32.xlu0 %v866, 112
        %v871 = vpop.permute.xlu0 %870
        %v874 = vunpack.c.l.b16 %v867
        %v875 = vunpack.c.l.b16 %v868
        %v876 = vpack.c.b16 %v875, %v874
        %vm878 = vcmask 130048
        %v880 = vsel %vm878, %v871, 0
        %882 = vmatpush.bf16.msra.mxu0 0
        %883 = vmatpush.bf16.msra.mxu0 0
        %884 = vmatpush.bf16.msra.mxu0 0
        %885 = vmatpush.bf16.msra.mxu0 0
        %886 = vmatpush.bf16.msra.mxu0 0
        %887 = vmatpush.bf16.msra.mxu0 0
        %888 = vmatpush.bf16.msra.mxu0 0
        %889 = vmatpush.bf16.msra.mxu0 %v876
        %890 = vmatmul.bf16.gmra.mxu0 %v880
        %v891 = vpop.f32.mrf.mxu0
        %v892 = vadd.f32 0.0, %v891
        %v893 = vpop.f32.mrf.mxu0
        %v894 = vadd.f32 0.0, %v893
        %895 = vdwg.mxu0
        %v896 = vmax.f32 %v892, 1e-30
        %v897 = vmax.f32 %v894, 1e-30
        %v898 = vrcp.pop %v896
        %v899 = vrcp.pop %v897
        %902 = vrot.lane.b32.xlu0 %v898, 16
        %v903 = vpop.permute.xlu0 %902
        %904 = vrot.lane.b32.xlu0 %v899, 16
        %v905 = vpop.permute.xlu0 %904
        %v908 = vmul.f32 %v863, %v903
        %v909 = vmul.f32 %v865, %v905
        %v910 = vpack.c.bf16 %v908, %v908
        %v911 = vpack.c.bf16 %v909, %v909
        %914 = vrot.lane.b32.xlu0 %v910, 112
        %v915 = vpop.permute.xlu0 %914
        %916 = vrot.lane.b32.xlu0 %v911, 112
        %v917 = vpop.permute.xlu0 %916
        %vm920 = vcmask 125952
        %921 = vst.msk [vmem:[%s729] sm:$0xf] %vm920, %v915
        %922 = vst.msk [vmem:[%s729 + $0x4] sm:$0xf] %vm920, %v917
        %925 = vrot.lane.b32.xlu0 %v851, 16
        %v926 = vpop.permute.xlu0 %925
        %927 = vrot.lane.b32.xlu0 %v852, 16
        %v928 = vpop.permute.xlu0 %927
        %v931 = vmul.f32 %v908, %v926
        %v932 = vmul.f32 %v909, %v928
        %v933 = vpack.c.bf16 %v932, %v931
        %v934 = vld [vmem:[%s6] sm:$0xf]
        %v935 = vld [vmem:[%s6 + $0x4] sm:$0xf]
        %937 = vrot.lane.b32.xlu0 %v933, 112
        %v938 = vpop.permute.xlu0 %937
        %v941 = vunpack.c.l.b16 %v934
        %v942 = vunpack.c.l.b16 %v935
        %v943 = vpack.c.b16 %v942, %v941
        %v946 = vsel %vm878, %v938, 0
        %948 = vmatpush.bf16.msra.mxu0 0
        %949 = vmatpush.bf16.msra.mxu0 0
        %950 = vmatpush.bf16.msra.mxu0 0
        %951 = vmatpush.bf16.msra.mxu0 0
        %952 = vmatpush.bf16.msra.mxu0 0
        %953 = vmatpush.bf16.msra.mxu0 0
        %954 = vmatpush.bf16.msra.mxu0 0
        %955 = vmatpush.bf16.msra.mxu0 %v943
        %956 = vmatmul.bf16.gmra.mxu0 %v946
        %v957 = vpop.f32.mrf.mxu0
        %v958 = vadd.f32 0.0, %v957
        %v959 = vpop.f32.mrf.mxu0
        %v960 = vadd.f32 0.0, %v959
        %961 = vdwg.mxu0
        %v962 = vpack.c.bf16 %v960, %v958
        %v963 = vld [vmem:[%s763] sm:$0xf]
        %v964 = vld [vmem:[%s9] sm:$0x1]
        %v966 = vperm.slane %v964, 0
        %vm968 = vcmask 64512
        %v970 = vsel %vm968, %v962, 0
        %vm972 = vcmask 1043456
        %v974 = vsel %vm972, %v963, 0
        %976 = vmatpush.bf16.msra.mxu0 0
        %977 = vmatpush.bf16.msra.mxu0 0
        %978 = vmatpush.bf16.msra.mxu0 0
        %979 = vmatpush.bf16.msra.mxu0 0
        %980 = vmatpush.bf16.msra.mxu0 0
        %981 = vmatpush.bf16.msra.mxu0 0
        %982 = vmatpush.bf16.msra.mxu0 0
        %983 = vmatpush.bf16.msra.mxu0 %v974
        %984 = vmatmul.bf16.gmra.mxu0 %v970
        %v985 = vpop.f32.mrf.mxu0
        %v986 = vadd.f32 %v966, %v985
        %v987 = vpop.f32.mrf.mxu0
        %v988 = vadd.f32 %v966, %v987
        %989 = vdwg.mxu0
        %v990 = vadd.f32 %v771, %v986
        %v991 = vadd.f32 %v772, %v988
        %v992 = vsel %vm798, %v990, 0.0
        %993 = vadd.xlane.f32.xlu0 %v992
        %v994 = vpop.xlane.xlu0 %993
        %v995 = vsel %vm798, %v991, 0.0
        %996 = vadd.xlane.f32.xlu0 %v995
        %v997 = vpop.xlane.xlu0 %996
        %v998 = vrcp.pop 32.0
        %v999 = vmul.f32 32.0, %v998
        %v1000 = vsub.f32 1.0, %v999
        %v1001 = vmul.f32 %v998, %v1000
        %v1002 = vadd.f32 %v998, %v1001
        %vm1003 = vweird.f32 %v998
        %v1004 = vsel %vm1003, %v998, %v1002
        %v1005 = vmul.f32 %v994, %v1004
        %v1006 = vmul.f32 %v997, %v1004
        %v1007 = vsub.f32 %v990, %v1005
        %v1008 = vsub.f32 %v991, %v1006
        %v1009 = vmul.f32 %v1007, %v1007
        %v1010 = vmul.f32 %v1008, %v1008
        %v1011 = vsel %vm798, %v1009, 0.0
        %1012 = vadd.xlane.f32.xlu0 %v1011
        %v1013 = vpop.xlane.xlu0 %1012
        %v1014 = vsel %vm798, %v1010, 0.0
        %1015 = vadd.xlane.f32.xlu0 %v1014
        %v1016 = vpop.xlane.xlu0 %1015
        %v1017 = vmul.f32 %v1013, %v1004
        %v1018 = vmul.f32 %v1016, %v1004
        %v1019 = vadd.f32 %v1017, 1e-05
        %v1020 = vadd.f32 %v1018, 1e-05
        %v1021 = vrsqrt.pop %v1019
        %v1022 = vmul.f32 %v1021, %v1019
        %v1023 = vmul.f32 %v1022, %v1021
        %v1024 = vmul.f32 0.5, %v1023
        %v1025 = vsub.f32 1.5, %v1024
        %v1026 = vmul.f32 %v1021, %v1025
        %vm1027 = vweird.f32 %v1019
        %vm1028 = vweird.f32 %v1021
        %vm1029 = vmor %vm1027, %vm1028
        %v1030 = vsel %vm1029, %v1021, %v1026
        %v1031 = vrsqrt.pop %v1020
        %v1032 = vmul.f32 %v1031, %v1020
        %v1033 = vmul.f32 %v1032, %v1031
        %v1034 = vmul.f32 0.5, %v1033
        %v1035 = vsub.f32 1.5, %v1034
        %v1036 = vmul.f32 %v1031, %v1035
        %vm1037 = vweird.f32 %v1020
        %vm1038 = vweird.f32 %v1031
        %vm1039 = vmor %vm1037, %vm1038
        %v1040 = vsel %vm1039, %v1031, %v1036
        %v1041 = vmul.f32 %v1007, %v1030
        %v1042 = vmul.f32 %v1008, %v1040
        %v1043 = vld [vmem:[%s10] sm:$0x1]
        %v1045 = vperm.slane %v1043, 0
        %v1047 = vmul.f32 %v1041, %v1045
        %v1048 = vmul.f32 %v1042, %v1045
        %v1049 = vld [vmem:[%s11] sm:$0x1]
        %v1051 = vperm.slane %v1049, 0
        %v1053 = vadd.f32 %v1047, %v1051
        %v1054 = vadd.f32 %v1048, %v1051
        %v1055 = vpack.c.bf16 %v1054, %v1053
        %v1056 = vld [vmem:[%s12] sm:$0xf]
        %v1057 = vld [vmem:[%s12 + $0x4] sm:$0xf]
        %v1058 = vld [vmem:[%s12 + $0x8] sm:$0xf]
        %v1059 = vld [vmem:[%s12 + $0xc] sm:$0xf]
        %v1060 = vld [vmem:[%s13] sm:$0x1]
        %v1062 = vperm.slane %v1060, 0
        %v1068 = vunpack.c.l.b16 %v1056
        %v1069 = vunpack.c.l.b16 %v1057
        %v1070 = vunpack.c.l.b16 %v1058
        %v1071 = vunpack.c.l.b16 %v1059
        %v1072 = vpack.c.b16 %v1069, %v1068
        %v1073 = vpack.c.b16 %v1071, %v1070
        %v1077 = vsel %vm798, %v1055, 0
        %1079 = vmatpush.bf16.msra.mxu0 0
        %1080 = vmatpush.bf16.msra.mxu0 0
        %1081 = vmatpush.bf16.msra.mxu0 0
        %1082 = vmatpush.bf16.msra.mxu0 0
        %1083 = vmatpush.bf16.msra.mxu0 0
        %1084 = vmatpush.bf16.msra.mxu0 0
        %1085 = vmatpush.bf16.msra.mxu0 %v1073
        %1086 = vmatpush.bf16.msra.mxu0 %v1072
        %1087 = vmatmul.bf16.gmra.mxu0 %v1077
        %v1088 = vpop.f32.mrf.mxu0
        %v1089 = vadd.f32 %v1062, %v1088
        %v1090 = vpop.f32.mrf.mxu0
        %v1091 = vadd.f32 %v1062, %v1090
        %1092 = vdwg.mxu0
        %v1093 = vmax.f32 %v1089, 0.0
        %v1094 = vmax.f32 %v1091, 0.0
        %v1095 = vpack.c.bf16 %v1094, %v1093
        %v1096 = vld [vmem:[%s14] sm:$0xf]
        %v1097 = vld [vmem:[%s14 + $0x4] sm:$0xf]
        %v1098 = vld [vmem:[%s14 + $0x8] sm:$0xf]
        %v1099 = vld [vmem:[%s14 + $0xc] sm:$0xf]
        %v1100 = vld [vmem:[%s14 + $0x10] sm:$0xf]
        %v1101 = vld [vmem:[%s14 + $0x14] sm:$0xf]
        %v1102 = vld [vmem:[%s14 + $0x18] sm:$0xf]
        %v1103 = vld [vmem:[%s14 + $0x1c] sm:$0xf]
        %v1104 = vld [vmem:[%s15] sm:$0x1]
        %v1106 = vperm.slane %v1104, 0
        %v1116 = vunpack.c.l.b16 %v1096
        %v1117 = vunpack.c.l.b16 %v1097
        %v1118 = vunpack.c.l.b16 %v1098
        %v1119 = vunpack.c.l.b16 %v1099
        %v1120 = vunpack.c.l.b16 %v1100
        %v1121 = vunpack.c.l.b16 %v1101
        %v1122 = vunpack.c.l.b16 %v1102
        %v1123 = vunpack.c.l.b16 %v1103
        %v1124 = vpack.c.b16 %v1117, %v1116
        %v1125 = vpack.c.b16 %v1119, %v1118
        %v1126 = vpack.c.b16 %v1121, %v1120
        %v1127 = vpack.c.b16 %v1123, %v1122
        %vm1132 = vcmask 523264
        %v1134 = vsel %vm1132, %v1095, 0
        %1136 = vmatpush.bf16.msra.mxu0 0
        %1137 = vmatpush.bf16.msra.mxu0 0
        %1138 = vmatpush.bf16.msra.mxu0 0
        %1139 = vmatpush.bf16.msra.mxu0 0
        %1140 = vmatpush.bf16.msra.mxu0 %v1127
        %1141 = vmatpush.bf16.msra.mxu0 %v1126
        %1142 = vmatpush.bf16.msra.mxu0 %v1125
        %1143 = vmatpush.bf16.msra.mxu0 %v1124
        %1144 = vmatmul.bf16.gmra.mxu0 %v1134
        %v1145 = vpop.f32.mrf.mxu0
        %v1146 = vadd.f32 %v1106, %v1145
        %v1147 = vpop.f32.mrf.mxu0
        %v1148 = vadd.f32 %v1106, %v1147
        %1149 = vdwg.mxu0
        %v1150 = vadd.f32 %v1053, %v1146
        %v1151 = vadd.f32 %v1054, %v1148
        %v1152 = vsel %vm798, %v1150, 0.0
        %1153 = vadd.xlane.f32.xlu0 %v1152
        %v1154 = vpop.xlane.xlu0 %1153
        %v1155 = vsel %vm798, %v1151, 0.0
        %1156 = vadd.xlane.f32.xlu0 %v1155
        %v1157 = vpop.xlane.xlu0 %1156
        %v1158 = vmul.f32 %v1154, %v1004
        %v1159 = vmul.f32 %v1157, %v1004
        %v1160 = vsub.f32 %v1150, %v1158
        %v1161 = vsub.f32 %v1151, %v1159
        %v1162 = vmul.f32 %v1160, %v1160
        %v1163 = vmul.f32 %v1161, %v1161
        %v1164 = vsel %vm798, %v1162, 0.0
        %1165 = vadd.xlane.f32.xlu0 %v1164
        %v1166 = vpop.xlane.xlu0 %1165
        %v1167 = vsel %vm798, %v1163, 0.0
        %1168 = vadd.xlane.f32.xlu0 %v1167
        %v1169 = vpop.xlane.xlu0 %1168
        %v1170 = vmul.f32 %v1166, %v1004
        %v1171 = vmul.f32 %v1169, %v1004
        %v1172 = vadd.f32 %v1170, 1e-05
        %v1173 = vadd.f32 %v1171, 1e-05
        %v1174 = vrsqrt.pop %v1172
        %v1175 = vmul.f32 %v1174, %v1172
        %v1176 = vmul.f32 %v1175, %v1174
        %v1177 = vmul.f32 0.5, %v1176
        %v1178 = vsub.f32 1.5, %v1177
        %v1179 = vmul.f32 %v1174, %v1178
        %vm1180 = vweird.f32 %v1172
        %vm1181 = vweird.f32 %v1174
        %vm1182 = vmor %vm1180, %vm1181
        %v1183 = vsel %vm1182, %v1174, %v1179
        %v1184 = vrsqrt.pop %v1173
        %v1185 = vmul.f32 %v1184, %v1173
        %v1186 = vmul.f32 %v1185, %v1184
        %v1187 = vmul.f32 0.5, %v1186
        %v1188 = vsub.f32 1.5, %v1187
        %v1189 = vmul.f32 %v1184, %v1188
        %vm1190 = vweird.f32 %v1173
        %vm1191 = vweird.f32 %v1184
        %vm1192 = vmor %vm1190, %vm1191
        %v1193 = vsel %vm1192, %v1184, %v1189
        %v1194 = vmul.f32 %v1160, %v1183
        %v1195 = vmul.f32 %v1161, %v1193
        %v1196 = vld [vmem:[%s16] sm:$0x1]
        %v1198 = vperm.slane %v1196, 0
        %v1200 = vmul.f32 %v1194, %v1198
        %v1201 = vmul.f32 %v1195, %v1198
        %v1202 = vld [vmem:[%s17] sm:$0x1]
        %v1204 = vperm.slane %v1202, 0
        %v1206 = vadd.f32 %v1200, %v1204
        %v1207 = vadd.f32 %v1201, %v1204
        %v1208 = vpack.c.bf16 %v1206, %v1206
        %v1209 = vpack.c.bf16 %v1207, %v1207
        %vm1210 = vcmask 257024
        %1211 = vst.msk [vmem:[%s722] sm:$0xf] %vm1210, %v1208
        %1212 = vst.msk [vmem:[%s722 + $0x4] sm:$0xf] %vm1210, %v1209
        %s1213 = sand.u32 %s465, 1
        %s1214 = scalar_lea.sflag [#allocation4], %s1213
        %s1215 = sand.u32 %s465, 1
        %s1216 = smul.addr %s1215, 8
        %s1217 = scalar_lea.vmem [#allocation7], %s1216
        %s1218 = sand.u32 %s493, 1
        %s1219 = scalar_lea.sflag [#allocation9], %s1218
        %s1220 = sand.u32 %s493, 1
        %s1221 = smul.addr %s1220, 8
        %s1222 = scalar_lea.vmem [#allocation8], %s1221
        // Predicated region
        $region101: #{tpu_custom_call.1} parent=91 // pred_check
          %p1223 = pneg %p475
        $region102: #{tpu_custom_call.1} parent=91 // pred_check_branch
          %1225 = sbr.rel (%p1223) target = $region104
        $region103: #{tpu_custom_call.1} parent=91 // pred_region
          %s1226 = smul.u32 2, %s44
          %1228 = vsyncadd %s1214, 0
          %s1229 = smul.addr %s43, 2
          %s1230 = sadd.s32 %s1226, %s1229
          %s1231 = smul.addr %s1230, 4
          %s1232 = scalar_lea.hbm %s18, %s1231
          %s1233 = sshll.u32 %s1217, 4
          %s1234 = int_to_ptr.vmem [resolvable:$true] %s1233
          %s1235 = sshll.u32 %s1232, 4
          %s1236 = int_to_ptr.hbm [resolvable:$true] %s1235
          %1241 = dma.vmem_to_hbm [thread:$0]  %s1234, 128, %s1236, %s1214, 64, 64, 4
        $region104: #{tpu_custom_call.1} parent=91 // pred_fallthru
          _
        // Predicated region
        $region105: #{tpu_custom_call.1} parent=91 // pred_check
          %p1242 = pneg %p503
        $region106: #{tpu_custom_call.1} parent=91 // pred_check_branch
          %1244 = sbr.rel (%p1242) target = $region108
        $region107: #{tpu_custom_call.1} parent=91 // pred_region
          %s1245 = smul.u32 2, %s44
          %1247 = vsyncadd %s1219, 0
          %s1248 = smul.addr %s43, 2
          %s1249 = sadd.s32 %s1245, %s1248
          %s1250 = smul.addr %s1249, 4
          %s1251 = scalar_lea.hbm %s19, %s1250
          %s1252 = sshll.u32 %s1222, 4
          %s1253 = int_to_ptr.vmem [resolvable:$true] %s1252
          %s1254 = sshll.u32 %s1251, 4
          %s1255 = int_to_ptr.hbm [resolvable:$true] %s1254
          %1260 = dma.vmem_to_hbm [thread:$0]  %s1253, 128, %s1255, %s1219, 64, 64, 4
        $region108: #{tpu_custom_call.1} parent=91 // pred_fallthru
          _
      $region92: #{tpu_custom_call.1} parent=5 // pred_fallthru
        _
      %p1261 = scmp.le.s32.totalorder 2, %s34
      // Predicated region
      $region109: #{tpu_custom_call.1} parent=5 // pred_check
        %p1262 = pneg %p1261
      $region110: #{tpu_custom_call.1} parent=5 // pred_check_branch
        %1264 = sbr.rel (%p1262) target = $region112
      $region111: #{tpu_custom_call.1} parent=5 // pred_region
        %s1265 = ssub.s32 %s34, 2
        // Predicated region
        $region113: #{tpu_custom_call.1} parent=111 // pred_check
          %p1266 = pneg %p481
        $region114: #{tpu_custom_call.1} parent=111 // pred_check_branch
          %1268 = sbr.rel (%p1266) target = $region116
        $region115: #{tpu_custom_call.1} parent=111 // pred_region
          %s1269 = sand.u32 %s466, 1
          %s1270 = scalar_lea.sflag [#allocation4], %s1269
          %s1271 = sand.u32 %s466, 1
          %s1272 = smul.addr %s1271, 8
          %s1273 = scalar_lea.vmem [#allocation7], %s1272
          %1275 = dma.done %s1270, 128
        $region116: #{tpu_custom_call.1} parent=111 // pred_fallthru
          _
        // Predicated region
        $region117: #{tpu_custom_call.1} parent=111 // pred_check
          %p1276 = pneg %p509
        $region118: #{tpu_custom_call.1} parent=111 // pred_check_branch
          %1278 = sbr.rel (%p1276) target = $region120
        $region119: #{tpu_custom_call.1} parent=111 // pred_region
          %s1279 = sand.u32 %s494, 1
          %s1280 = scalar_lea.sflag [#allocation9], %s1279
          %s1281 = sand.u32 %s494, 1
          %s1282 = smul.addr %s1281, 8
          %s1283 = scalar_lea.vmem [#allocation8], %s1282
          %1285 = dma.done %s1280, 128
        $region120: #{tpu_custom_call.1} parent=111 // pred_fallthru
          _
      $region112: #{tpu_custom_call.1} parent=5 // pred_fallthru
        _
    $region6: #{tpu_custom_call.1} parent=1 // loop_footer
      %s38 = sadd.s32 1, %s34
    $region7: #{tpu_custom_call.1} parent=1 // loop_footer_branch
      %33 = sbr.rel target = $region3
    $region8: #{tpu_custom_call.1} parent=1 // loop_exit
      _
    %1286 = vsyncpa [#allocation3], 1
    %s1287 = scalar_lea.sflag [#allocation3], 1
    %1288 = vsyncpa %s1287, 1
    %1289 = vsyncpa [#allocation4], 1
    %s1290 = scalar_lea.sflag [#allocation4], 1
    %1291 = vsyncpa %s1290, 1
    %1292 = vsyncpa [#allocation9], 1
    %s1293 = scalar_lea.sflag [#allocation9], 1
    %1294 = vsyncpa %s1293, 1
    %1295 = vsyncpa [#allocation5], 1
    %s1296 = scalar_lea.sflag [#allocation5], 1
    %1297 = vsyncpa %s1296, 1

</llo_original>
